<compile_context>
chip_gen: v6e
topology: v6e:2x2x1
jax: 0.10.0
libtpu: 0.0.40
codegen_flags: <defaults>
</compile_context>

<pallas_src>
import math

import jax
import jax.numpy as jnp
from jax import lax
from jax.experimental import pallas as pl
from jax.experimental.pallas import tpu as pltpu


def _gelu_tanh(x):
    # tanh-approximate GELU (all VPU/EUP ops; close to torch F.gelu).
    c = math.sqrt(2.0 / math.pi)
    return 0.5 * x * (1.0 + jnp.tanh(c * (x + 0.044715 * x * x * x)))


def make_encoder_layer_kernel(d_model, nhead, dim_feedforward, seq_len, q_tile,
                              activation="gelu"):
    head_dim = d_model // nhead
    scale = 1.0 / math.sqrt(head_dim)
    eps = 1e-5
    bf16 = jnp.bfloat16
    f32 = jnp.float32

    def kernel(src_ref, pos_ref,
               wq_ref, wk_ref, wv_ref, bq_ref, bk_ref, bv_ref,
               wo_ref, bo_ref,
               w1_ref, b1_ref, w2_ref, b2_ref,
               g1_ref, be1_ref, g2_ref, be2_ref,
               out_ref):
        # ---- hoist parameter loads (no repeated VMEM reads / re-broadcasts) ----
        wq = wq_ref[...]      # (D, D)  bf16, pre-transposed: y = x @ wq
        wk = wk_ref[...]      # (D, D)  bf16
        wv = wv_ref[...]      # (D, D)  bf16
        wo = wo_ref[...]      # (D, D)  bf16, pre-transposed
        w1 = w1_ref[...]      # (D, F)  bf16
        w2 = w2_ref[...]      # (F, D)  bf16
        bq = bq_ref[...]      # (1, D)  f32
        bk = bk_ref[...]
        bv = bv_ref[...]
        bo = bo_ref[...]
        b1 = b1_ref[...]      # (1, F)
        b2 = b2_ref[...]
        g1 = g1_ref[...]
        be1 = be1_ref[...]
        g2 = g2_ref[...]
        be2 = be2_ref[...]

        # ---- full-sequence inputs (K/V side) ----
        src_full = src_ref[0]                           # (S, D) f32
        pos_full = pos_ref[0]                           # (S, D) f32
        x_kv16 = (src_full + pos_full).astype(bf16)     # k input (with pos)
        src16 = src_full.astype(bf16)                   # v input (no pos)

        # ---- query tile of the sequence ----
        if q_tile == seq_len:
            src_q = src_full
            pos_q = pos_full
        else:
            q_start = pl.multiple_of(pl.program_id(1) * q_tile, q_tile)
            src_q = src_ref[0, pl.ds(q_start, q_tile), :]   # (TQ, D) residual
            pos_q = pos_ref[0, pl.ds(q_start, q_tile), :]
        x_q16 = (src_q + pos_q).astype(bf16)

        # ---- input projections (pre-transposed weights: y = x @ W_t + b) ----
        q = jnp.dot(x_q16, wq, preferred_element_type=f32) + bq    # (TQ, D)
        k = jnp.dot(x_kv16, wk, preferred_element_type=f32) + bk   # (S, D)
        v = jnp.dot(src16, wv, preferred_element_type=f32) + bv    # (S, D)
        q16 = q.astype(bf16)
        k16 = k.astype(bf16)
        v16 = v.astype(bf16)

        # ---- per-head attention, output projection folded into accumulation ----
        acc = jnp.zeros((q_tile, d_model), dtype=f32)
        for h in range(nhead):
            sl = slice(h * head_dim, (h + 1) * head_dim)
            qh = q16[:, sl]                      # (TQ, hd) bf16
            kh = k16[:, sl]                      # (S, hd)  bf16
            vh = v16[:, sl]                      # (S, hd)  bf16
            # scores: contract last dims of both operands (no explicit kh.T)
            s = jnp.einsum('qd,kd->qk', qh, kh,
                           preferred_element_type=f32) * scale      # (TQ, S) f32
            s = s - jnp.max(s, axis=-1, keepdims=True)
            p = jnp.exp(s)
            denom = jnp.sum(p, axis=-1, keepdims=True)
            p = p * pl.reciprocal(denom, approx=True)
            oh = jnp.dot(p.astype(bf16), vh,
                         preferred_element_type=f32)                # (TQ, hd)
            acc = acc + jnp.dot(oh.astype(bf16), wo[sl, :],
                                preferred_element_type=f32)         # (TQ, D)
        attn = acc + bo

        # ---- residual + norm1 (post-norm; dropout1 = identity) ----
        x1 = src_q + attn
        mu1 = jnp.mean(x1, axis=-1, keepdims=True)
        var1 = jnp.mean((x1 - mu1) ** 2, axis=-1, keepdims=True)
        x1n = (x1 - mu1) * lax.rsqrt(var1 + eps) * g1 + be1

        # ---- FFN: linear2(act(linear1(x))), dropout = identity ----
        h1 = jnp.dot(x1n.astype(bf16), w1, preferred_element_type=f32) + b1
        if activation == "relu":
            h1 = jnp.maximum(h1, 0.0)
        else:
            h1 = _gelu_tanh(h1)
        h2 = jnp.dot(h1.astype(bf16), w2, preferred_element_type=f32) + b2

        # ---- residual + norm2 ----
        x2 = x1n + h2
        mu2 = jnp.mean(x2, axis=-1, keepdims=True)
        var2 = jnp.mean((x2 - mu2) ** 2, axis=-1, keepdims=True)
        out = (x2 - mu2) * lax.rsqrt(var2 + eps) * g2 + be2

        out_ref[0] = out.astype(out_ref.dtype)

    return kernel


def _pick_q_tile(seq_len, max_tile=256):
    """Largest divisor of S that is <= max_tile and a multiple of 8 (else S)."""
    for t in range(min(seq_len, max_tile), 0, -1):
        if seq_len % t == 0 and (t % 8 == 0 or t == seq_len):
            return t
    return seq_len


def prepare_params(params):
    """Torch-convention params -> kernel layout (pre-transposed, bf16 weights)."""
    d = params["wqkv"].shape[1]
    wqkv_t = params["wqkv"].T                    # (D, 3D)
    bqkv = params["bqkv"].reshape(1, -1)         # (1, 3D)
    bf16 = jnp.bfloat16
    return {
        "wq": wqkv_t[:, 0:d].astype(bf16),
        "wk": wqkv_t[:, d:2 * d].astype(bf16),
        "wv": wqkv_t[:, 2 * d:3 * d].astype(bf16),
        "bq": bqkv[:, 0:d],
        "bk": bqkv[:, d:2 * d],
        "bv": bqkv[:, 2 * d:3 * d],
        "wo": params["wo"].T.astype(bf16),       # (D, D)
        "bo": params["bo"].reshape(1, -1),
        "w1": params["w1"].T.astype(bf16),       # (D, F)
        "b1": params["b1"].reshape(1, -1),
        "w2": params["w2"].T.astype(bf16),       # (F, D)
        "b2": params["b2"].reshape(1, -1),
        "g1": params["g1"].reshape(1, -1),
        "be1": params["be1"].reshape(1, -1),
        "g2": params["g2"].reshape(1, -1),
        "be2": params["be2"].reshape(1, -1),
    }


def transformer_encoder_layer(src, pos_embed, params, nhead,
                              activation="gelu", block_q=256):
    """src, pos_embed: (B, S, D) float32. Returns (B, S, D) float32."""
    B, S, D = src.shape
    kp = prepare_params(params)
    dim_ff = kp["w1"].shape[1]
    tq = _pick_q_tile(S, block_q)
    num_t = S // tq

    kernel = make_encoder_layer_kernel(D, nhead, dim_ff, S, tq, activation)

    def rep_spec(shape):
        n = len(shape)
        return pl.BlockSpec(shape, lambda b, t, n=n: (0,) * n)

    in_specs = [
        pl.BlockSpec((1, S, D), lambda b, t: (b, 0, 0)),   # src (full seq)
        pl.BlockSpec((1, S, D), lambda b, t: (b, 0, 0)),   # pos_embed (full seq)
        rep_spec((D, D)),        # wq
        rep_spec((D, D)),        # wk
        rep_spec((D, D)),        # wv
        rep_spec((1, D)),        # bq
        rep_spec((1, D)),        # bk
        rep_spec((1, D)),        # bv
        rep_spec((D, D)),        # wo
        rep_spec((1, D)),        # bo
        rep_spec((D, dim_ff)),   # w1
        rep_spec((1, dim_ff)),   # b1
        rep_spec((dim_ff, D)),   # w2
        rep_spec((1, D)),        # b2
        rep_spec((1, D)),        # g1
        rep_spec((1, D)),        # be1
        rep_spec((1, D)),        # g2
        rep_spec((1, D)),        # be2
    ]

    return pl.pallas_call(
        kernel,
        out_shape=jax.ShapeDtypeStruct((B, S, D), jnp.float32),
        grid=(B, num_t),
        in_specs=in_specs,
        out_specs=pl.BlockSpec((1, tq, D), lambda b, t: (b, t, 0)),
        compiler_params=pltpu.CompilerParams(
            dimension_semantics=("parallel", "parallel")),
    )(src, pos_embed,
      kp["wq"], kp["wk"], kp["wv"], kp["bq"], kp["bk"], kp["bv"],
      kp["wo"], kp["bo"], kp["w1"], kp["b1"], kp["w2"], kp["b2"],
      kp["g1"], kp["be1"], kp["g2"], kp["be2"])


def init_params(key, d_model, nhead, dim_feedforward):
    ks = jax.random.split(key, 8)
    s = 0.02
    return {
        "wqkv": s * jax.random.normal(ks[0], (3 * d_model, d_model), jnp.float32),
        "bqkv": s * jax.random.normal(ks[1], (1, 3 * d_model), jnp.float32),
        "wo":   s * jax.random.normal(ks[2], (d_model, d_model), jnp.float32),
        "bo":   s * jax.random.normal(ks[3], (1, d_model), jnp.float32),
        "w1":   s * jax.random.normal(ks[4], (dim_feedforward, d_model), jnp.float32),
        "b1":   s * jax.random.normal(ks[5], (1, dim_feedforward), jnp.float32),
        "w2":   s * jax.random.normal(ks[6], (d_model, dim_feedforward), jnp.float32),
        "b2":   s * jax.random.normal(ks[7], (1, d_model), jnp.float32),
        "g1":   jnp.ones((1, d_model), jnp.float32),
        "be1":  jnp.zeros((1, d_model), jnp.float32),
        "g2":   jnp.ones((1, d_model), jnp.float32),
        "be2":  jnp.zeros((1, d_model), jnp.float32),
    }


if __name__ == "__main__":
    # TODO(synk): src_mask (attn_mask) path not implemented; the RT-DETR hybrid
    # encoder always calls the layer with src_mask=None.
    # TODO(synk): the conv/FPN/PAN parts of HybridEncoder (ConvNormLayer,
    # RepVggBlock, CSPRepLayer, input_proj, interpolate) are not covered here;
    # this kernel implements the TransformerEncoderLayer used on the P5 level.
    B, S, D = 2, 8, 32
    NHEAD, DIM_FF = 4, 64

    key = jax.random.PRNGKey(0)
    k_src, k_pos, k_par = jax.random.split(key, 3)
    src = jax.random.normal(k_src, (B, S, D), jnp.float32)
    pos = jax.random.normal(k_pos, (B, S, D), jnp.float32)
    params = init_params(k_par, D, NHEAD, DIM_FF)

    # Single-tile path (q_tile == S), gelu activation (HybridEncoder enc_act).
    out = transformer_encoder_layer(src, pos, params, NHEAD, activation="gelu")
    jax.block_until_ready(out)
    assert out.shape == (B, S, D)

    # Multi-tile path: S=16 with block_q=8 -> 2 query tiles per batch element.
    S2 = 16
    k_src2, k_pos2 = jax.random.split(jax.random.PRNGKey(1), 2)
    src2 = jax.random.normal(k_src2, (B, S2, D), jnp.float32)
    pos2 = jax.random.normal(k_pos2, (B, S2, D), jnp.float32)
    out2 = transformer_encoder_layer(src2, pos2, params, NHEAD,
                                     activation="gelu", block_q=8)
    jax.block_until_ready(out2)
    assert out2.shape == (B, S2, D)

    print("KERNEL_OK")
</pallas_src>

<mosaic_0001>
module attributes {stable_mosaic.version = 11 : i64} {
  func.func @kernel(%arg0: i32, %arg1: i32, %arg2: memref<1x8x32xf32, #tpu.memory_space<vmem>>, %arg3: memref<1x8x32xf32, #tpu.memory_space<vmem>>, %arg4: memref<32x32xbf16, #tpu.memory_space<vmem>>, %arg5: memref<32x32xbf16, #tpu.memory_space<vmem>>, %arg6: memref<32x32xbf16, #tpu.memory_space<vmem>>, %arg7: memref<1x32xf32, #tpu.memory_space<vmem>>, %arg8: memref<1x32xf32, #tpu.memory_space<vmem>>, %arg9: memref<1x32xf32, #tpu.memory_space<vmem>>, %arg10: memref<32x32xbf16, #tpu.memory_space<vmem>>, %arg11: memref<1x32xf32, #tpu.memory_space<vmem>>, %arg12: memref<32x64xbf16, #tpu.memory_space<vmem>>, %arg13: memref<1x64xf32, #tpu.memory_space<vmem>>, %arg14: memref<64x32xbf16, #tpu.memory_space<vmem>>, %arg15: memref<1x32xf32, #tpu.memory_space<vmem>>, %arg16: memref<1x32xf32, #tpu.memory_space<vmem>>, %arg17: memref<1x32xf32, #tpu.memory_space<vmem>>, %arg18: memref<1x32xf32, #tpu.memory_space<vmem>>, %arg19: memref<1x32xf32, #tpu.memory_space<vmem>>, %arg20: memref<1x8x32xf32, #tpu.memory_space<vmem>>) attributes {dimension_semantics = [#tpu.dimension_semantics<parallel>, #tpu.dimension_semantics<parallel>], iteration_bounds = array<i64: 2, 1>, scalar_prefetch = 0 : i64, scratch_operands = 0 : i64, tpu.core_type = #tpu.core_type<tc>, window_params = [{transform_indices = @transform_0, window_bounds = array<i64: 1, 8, 32>}, {transform_indices = @transform_1, window_bounds = array<i64: 1, 8, 32>}, {pipeline_mode = #tpu.pipeline_mode<synchronous>, transform_indices = @transform_2, window_bounds = array<i64: 32, 32>}, {pipeline_mode = #tpu.pipeline_mode<synchronous>, transform_indices = @transform_3, window_bounds = array<i64: 32, 32>}, {pipeline_mode = #tpu.pipeline_mode<synchronous>, transform_indices = @transform_4, window_bounds = array<i64: 32, 32>}, {pipeline_mode = #tpu.pipeline_mode<synchronous>, transform_indices = @transform_5, window_bounds = array<i64: 1, 32>}, {pipeline_mode = #tpu.pipeline_mode<synchronous>, transform_indices = @transform_6, window_bounds = array<i64: 1, 32>}, {pipeline_mode = #tpu.pipeline_mode<synchronous>, transform_indices = @transform_7, window_bounds = array<i64: 1, 32>}, {pipeline_mode = #tpu.pipeline_mode<synchronous>, transform_indices = @transform_8, window_bounds = array<i64: 32, 32>}, {pipeline_mode = #tpu.pipeline_mode<synchronous>, transform_indices = @transform_9, window_bounds = array<i64: 1, 32>}, {pipeline_mode = #tpu.pipeline_mode<synchronous>, transform_indices = @transform_10, window_bounds = array<i64: 32, 64>}, {pipeline_mode = #tpu.pipeline_mode<synchronous>, transform_indices = @transform_11, window_bounds = array<i64: 1, 64>}, {pipeline_mode = #tpu.pipeline_mode<synchronous>, transform_indices = @transform_12, window_bounds = array<i64: 64, 32>}, {pipeline_mode = #tpu.pipeline_mode<synchronous>, transform_indices = @transform_13, window_bounds = array<i64: 1, 32>}, {pipeline_mode = #tpu.pipeline_mode<synchronous>, transform_indices = @transform_14, window_bounds = array<i64: 1, 32>}, {pipeline_mode = #tpu.pipeline_mode<synchronous>, transform_indices = @transform_15, window_bounds = array<i64: 1, 32>}, {pipeline_mode = #tpu.pipeline_mode<synchronous>, transform_indices = @transform_16, window_bounds = array<i64: 1, 32>}, {pipeline_mode = #tpu.pipeline_mode<synchronous>, transform_indices = @transform_17, window_bounds = array<i64: 1, 32>}, {transform_indices = @transform_18, window_bounds = array<i64: 1, 8, 32>}]} {
    %c0 = arith.constant 0 : index
    %c0_0 = arith.constant 0 : index
    %0 = vector.load %arg4[%c0, %c0_0] : memref<32x32xbf16, #tpu.memory_space<vmem>>, vector<32x32xbf16>
    %c0_1 = arith.constant 0 : index
    %c0_2 = arith.constant 0 : index
    %1 = vector.load %arg5[%c0_1, %c0_2] : memref<32x32xbf16, #tpu.memory_space<vmem>>, vector<32x32xbf16>
    %c0_3 = arith.constant 0 : index
    %c0_4 = arith.constant 0 : index
    %2 = vector.load %arg6[%c0_3, %c0_4] : memref<32x32xbf16, #tpu.memory_space<vmem>>, vector<32x32xbf16>
    %c0_5 = arith.constant 0 : index
    %c0_6 = arith.constant 0 : index
    %3 = vector.load %arg10[%c0_5, %c0_6] : memref<32x32xbf16, #tpu.memory_space<vmem>>, vector<32x32xbf16>
    %c0_7 = arith.constant 0 : index
    %c0_8 = arith.constant 0 : index
    %4 = vector.load %arg12[%c0_7, %c0_8] : memref<32x64xbf16, #tpu.memory_space<vmem>>, vector<32x64xbf16>
    %c0_9 = arith.constant 0 : index
    %c0_10 = arith.constant 0 : index
    %5 = vector.load %arg14[%c0_9, %c0_10] : memref<64x32xbf16, #tpu.memory_space<vmem>>, vector<64x32xbf16>
    %c0_11 = arith.constant 0 : index
    %c0_12 = arith.constant 0 : index
    %6 = vector.load %arg7[%c0_11, %c0_12] : memref<1x32xf32, #tpu.memory_space<vmem>>, vector<1x32xf32>
    %c0_13 = arith.constant 0 : index
    %c0_14 = arith.constant 0 : index
    %7 = vector.load %arg8[%c0_13, %c0_14] : memref<1x32xf32, #tpu.memory_space<vmem>>, vector<1x32xf32>
    %c0_15 = arith.constant 0 : index
    %c0_16 = arith.constant 0 : index
    %8 = vector.load %arg9[%c0_15, %c0_16] : memref<1x32xf32, #tpu.memory_space<vmem>>, vector<1x32xf32>
    %c0_17 = arith.constant 0 : index
    %c0_18 = arith.constant 0 : index
    %9 = vector.load %arg11[%c0_17, %c0_18] : memref<1x32xf32, #tpu.memory_space<vmem>>, vector<1x32xf32>
    %c0_19 = arith.constant 0 : index
    %c0_20 = arith.constant 0 : index
    %10 = vector.load %arg13[%c0_19, %c0_20] : memref<1x64xf32, #tpu.memory_space<vmem>>, vector<1x64xf32>
    %c0_21 = arith.constant 0 : index
    %c0_22 = arith.constant 0 : index
    %11 = vector.load %arg15[%c0_21, %c0_22] : memref<1x32xf32, #tpu.memory_space<vmem>>, vector<1x32xf32>
    %c0_23 = arith.constant 0 : index
    %c0_24 = arith.constant 0 : index
    %12 = vector.load %arg16[%c0_23, %c0_24] : memref<1x32xf32, #tpu.memory_space<vmem>>, vector<1x32xf32>
    %c0_25 = arith.constant 0 : index
    %c0_26 = arith.constant 0 : index
    %13 = vector.load %arg17[%c0_25, %c0_26] : memref<1x32xf32, #tpu.memory_space<vmem>>, vector<1x32xf32>
    %c0_27 = arith.constant 0 : index
    %c0_28 = arith.constant 0 : index
    %14 = vector.load %arg18[%c0_27, %c0_28] : memref<1x32xf32, #tpu.memory_space<vmem>>, vector<1x32xf32>
    %c0_29 = arith.constant 0 : index
    %c0_30 = arith.constant 0 : index
    %15 = vector.load %arg19[%c0_29, %c0_30] : memref<1x32xf32, #tpu.memory_space<vmem>>, vector<1x32xf32>
    %c0_31 = arith.constant 0 : index
    %c0_32 = arith.constant 0 : index
    %c0_33 = arith.constant 0 : index
    %16 = vector.load %arg2[%c0_31, %c0_32, %c0_33] : memref<1x8x32xf32, #tpu.memory_space<vmem>>, vector<1x8x32xf32>
    %17 = vector.shape_cast %16 : vector<1x8x32xf32> to vector<8x32xf32>
    %c0_34 = arith.constant 0 : index
    %c0_35 = arith.constant 0 : index
    %c0_36 = arith.constant 0 : index
    %18 = vector.load %arg3[%c0_34, %c0_35, %c0_36] : memref<1x8x32xf32, #tpu.memory_space<vmem>>, vector<1x8x32xf32>
    %19 = vector.shape_cast %18 : vector<1x8x32xf32> to vector<8x32xf32>
    %20 = arith.addf %17, %19 : vector<8x32xf32>
    %21 = arith.truncf %20 : vector<8x32xf32> to vector<8x32xbf16>
    %22 = arith.truncf %17 : vector<8x32xf32> to vector<8x32xbf16>
    %23 = arith.addf %17, %19 : vector<8x32xf32>
    %24 = arith.truncf %23 : vector<8x32xf32> to vector<8x32xbf16>
    %cst = arith.constant dense<0.000000e+00> : vector<8x32xf32>
    %25 = tpu.matmul %24, %0, %cst {dimension_numbers = #tpu.dot_dimension_numbers<[1], [0], [0], [1], [0, 0, 1, 1], [], []>} : vector<8x32xbf16>, vector<32x32xbf16>, vector<8x32xf32> -> vector<8x32xf32>
    %26 = vector.broadcast %6 : vector<1x32xf32> to vector<8x32xf32>
    %27 = arith.addf %25, %26 : vector<8x32xf32>
    %cst_37 = arith.constant dense<0.000000e+00> : vector<8x32xf32>
    %28 = tpu.matmul %21, %1, %cst_37 {dimension_numbers = #tpu.dot_dimension_numbers<[1], [0], [0], [1], [0, 0, 1, 1], [], []>} : vector<8x32xbf16>, vector<32x32xbf16>, vector<8x32xf32> -> vector<8x32xf32>
    %29 = vector.broadcast %7 : vector<1x32xf32> to vector<8x32xf32>
    %30 = arith.addf %28, %29 : vector<8x32xf32>
    %cst_38 = arith.constant dense<0.000000e+00> : vector<8x32xf32>
    %31 = tpu.matmul %22, %2, %cst_38 {dimension_numbers = #tpu.dot_dimension_numbers<[1], [0], [0], [1], [0, 0, 1, 1], [], []>} : vector<8x32xbf16>, vector<32x32xbf16>, vector<8x32xf32> -> vector<8x32xf32>
    %32 = vector.broadcast %8 : vector<1x32xf32> to vector<8x32xf32>
    %33 = arith.addf %31, %32 : vector<8x32xf32>
    %34 = arith.truncf %27 : vector<8x32xf32> to vector<8x32xbf16>
    %35 = arith.truncf %30 : vector<8x32xf32> to vector<8x32xbf16>
    %36 = arith.truncf %33 : vector<8x32xf32> to vector<8x32xbf16>
    %cst_39 = arith.constant 0.000000e+00 : f32
    %37 = vector.broadcast %cst_39 : f32 to vector<8x32xf32>
    %38 = vector.extract_strided_slice %34 {offsets = [0, 0], sizes = [8, 8], strides = [1, 1]} : vector<8x32xbf16> to vector<8x8xbf16>
    %39 = vector.extract_strided_slice %35 {offsets = [0, 0], sizes = [8, 8], strides = [1, 1]} : vector<8x32xbf16> to vector<8x8xbf16>
    %40 = vector.extract_strided_slice %36 {offsets = [0, 0], sizes = [8, 8], strides = [1, 1]} : vector<8x32xbf16> to vector<8x8xbf16>
    "tpu.trace_start"() <{level = 10 : i32, message = "qd,kd->qk"}> : () -> ()
    %cst_40 = arith.constant dense<0.000000e+00> : vector<8x8xf32>
    %41 = tpu.matmul %38, %39, %cst_40 {dimension_numbers = #tpu.dot_dimension_numbers<[1], [1], [0], [0], [0, 0, 1, 0], [], []>} : vector<8x8xbf16>, vector<8x8xbf16>, vector<8x8xf32> -> vector<8x8xf32>
    "tpu.trace_stop"() : () -> ()
    %cst_41 = arith.constant 0.353553385 : f32
    %42 = vector.broadcast %cst_41 : f32 to vector<8x8xf32>
    %43 = arith.mulf %41, %42 : vector<8x8xf32>
    %cst_42 = arith.constant dense<0xFF800000> : vector<8xf32>
    %44 = vector.multi_reduction <maximumf>, %43, %cst_42 [1] : vector<8x8xf32> to vector<8xf32>
    %45 = vector.shape_cast %44 : vector<8xf32> to vector<8x1xf32>
    %46 = vector.broadcast %45 : vector<8x1xf32> to vector<8x8xf32>
    %47 = arith.subf %43, %46 : vector<8x8xf32>
    %48 = math.exp %47 : vector<8x8xf32>
    %cst_43 = arith.constant dense<0.000000e+00> : vector<8xf32>
    %49 = vector.multi_reduction <add>, %48, %cst_43 [1] : vector<8x8xf32> to vector<8xf32>
    %50 = vector.shape_cast %49 : vector<8xf32> to vector<8x1xf32>
    %51 = tpu.reciprocal %50 {approx = true} : vector<8x1xf32> -> vector<8x1xf32>
    %52 = vector.broadcast %51 : vector<8x1xf32> to vector<8x8xf32>
    %53 = arith.mulf %48, %52 : vector<8x8xf32>
    %54 = arith.truncf %53 : vector<8x8xf32> to vector<8x8xbf16>
    %cst_44 = arith.constant dense<0.000000e+00> : vector<8x8xf32>
    %55 = tpu.matmul %54, %40, %cst_44 {dimension_numbers = #tpu.dot_dimension_numbers<[1], [0], [0], [1], [0, 0, 1, 1], [], []>} : vector<8x8xbf16>, vector<8x8xbf16>, vector<8x8xf32> -> vector<8x8xf32>
    %56 = arith.truncf %55 : vector<8x8xf32> to vector<8x8xbf16>
    %57 = vector.extract_strided_slice %3 {offsets = [0, 0], sizes = [8, 32], strides = [1, 1]} : vector<32x32xbf16> to vector<8x32xbf16>
    %cst_45 = arith.constant dense<0.000000e+00> : vector<8x32xf32>
    %58 = tpu.matmul %56, %57, %cst_45 {dimension_numbers = #tpu.dot_dimension_numbers<[1], [0], [0], [1], [0, 0, 1, 1], [], []>} : vector<8x8xbf16>, vector<8x32xbf16>, vector<8x32xf32> -> vector<8x32xf32>
    %59 = arith.addf %37, %58 : vector<8x32xf32>
    %60 = vector.extract_strided_slice %34 {offsets = [0, 8], sizes = [8, 8], strides = [1, 1]} : vector<8x32xbf16> to vector<8x8xbf16>
    %61 = vector.extract_strided_slice %35 {offsets = [0, 8], sizes = [8, 8], strides = [1, 1]} : vector<8x32xbf16> to vector<8x8xbf16>
    %62 = vector.extract_strided_slice %36 {offsets = [0, 8], sizes = [8, 8], strides = [1, 1]} : vector<8x32xbf16> to vector<8x8xbf16>
    "tpu.trace_start"() <{level = 10 : i32, message = "qd,kd->qk"}> : () -> ()
    %cst_46 = arith.constant dense<0.000000e+00> : vector<8x8xf32>
    %63 = tpu.matmul %60, %61, %cst_46 {dimension_numbers = #tpu.dot_dimension_numbers<[1], [1], [0], [0], [0, 0, 1, 0], [], []>} : vector<8x8xbf16>, vector<8x8xbf16>, vector<8x8xf32> -> vector<8x8xf32>
    "tpu.trace_stop"() : () -> ()
    %cst_47 = arith.constant 0.353553385 : f32
    %64 = vector.broadcast %cst_47 : f32 to vector<8x8xf32>
    %65 = arith.mulf %63, %64 : vector<8x8xf32>
    %cst_48 = arith.constant dense<0xFF800000> : vector<8xf32>
    %66 = vector.multi_reduction <maximumf>, %65, %cst_48 [1] : vector<8x8xf32> to vector<8xf32>
    %67 = vector.shape_cast %66 : vector<8xf32> to vector<8x1xf32>
    %68 = vector.broadcast %67 : vector<8x1xf32> to vector<8x8xf32>
    %69 = arith.subf %65, %68 : vector<8x8xf32>
    %70 = math.exp %69 : vector<8x8xf32>
    %cst_49 = arith.constant dense<0.000000e+00> : vector<8xf32>
    %71 = vector.multi_reduction <add>, %70, %cst_49 [1] : vector<8x8xf32> to vector<8xf32>
    %72 = vector.shape_cast %71 : vector<8xf32> to vector<8x1xf32>
    %73 = tpu.reciprocal %72 {approx = true} : vector<8x1xf32> -> vector<8x1xf32>
    %74 = vector.broadcast %73 : vector<8x1xf32> to vector<8x8xf32>
    %75 = arith.mulf %70, %74 : vector<8x8xf32>
    %76 = arith.truncf %75 : vector<8x8xf32> to vector<8x8xbf16>
    %cst_50 = arith.constant dense<0.000000e+00> : vector<8x8xf32>
    %77 = tpu.matmul %76, %62, %cst_50 {dimension_numbers = #tpu.dot_dimension_numbers<[1], [0], [0], [1], [0, 0, 1, 1], [], []>} : vector<8x8xbf16>, vector<8x8xbf16>, vector<8x8xf32> -> vector<8x8xf32>
    %78 = arith.truncf %77 : vector<8x8xf32> to vector<8x8xbf16>
    %79 = vector.extract_strided_slice %3 {offsets = [8, 0], sizes = [8, 32], strides = [1, 1]} : vector<32x32xbf16> to vector<8x32xbf16>
    %cst_51 = arith.constant dense<0.000000e+00> : vector<8x32xf32>
    %80 = tpu.matmul %78, %79, %cst_51 {dimension_numbers = #tpu.dot_dimension_numbers<[1], [0], [0], [1], [0, 0, 1, 1], [], []>} : vector<8x8xbf16>, vector<8x32xbf16>, vector<8x32xf32> -> vector<8x32xf32>
    %81 = arith.addf %59, %80 : vector<8x32xf32>
    %82 = vector.extract_strided_slice %34 {offsets = [0, 16], sizes = [8, 8], strides = [1, 1]} : vector<8x32xbf16> to vector<8x8xbf16>
    %83 = vector.extract_strided_slice %35 {offsets = [0, 16], sizes = [8, 8], strides = [1, 1]} : vector<8x32xbf16> to vector<8x8xbf16>
    %84 = vector.extract_strided_slice %36 {offsets = [0, 16], sizes = [8, 8], strides = [1, 1]} : vector<8x32xbf16> to vector<8x8xbf16>
    "tpu.trace_start"() <{level = 10 : i32, message = "qd,kd->qk"}> : () -> ()
    %cst_52 = arith.constant dense<0.000000e+00> : vector<8x8xf32>
    %85 = tpu.matmul %82, %83, %cst_52 {dimension_numbers = #tpu.dot_dimension_numbers<[1], [1], [0], [0], [0, 0, 1, 0], [], []>} : vector<8x8xbf16>, vector<8x8xbf16>, vector<8x8xf32> -> vector<8x8xf32>
    "tpu.trace_stop"() : () -> ()
    %cst_53 = arith.constant 0.353553385 : f32
    %86 = vector.broadcast %cst_53 : f32 to vector<8x8xf32>
    %87 = arith.mulf %85, %86 : vector<8x8xf32>
    %cst_54 = arith.constant dense<0xFF800000> : vector<8xf32>
    %88 = vector.multi_reduction <maximumf>, %87, %cst_54 [1] : vector<8x8xf32> to vector<8xf32>
    %89 = vector.shape_cast %88 : vector<8xf32> to vector<8x1xf32>
    %90 = vector.broadcast %89 : vector<8x1xf32> to vector<8x8xf32>
    %91 = arith.subf %87, %90 : vector<8x8xf32>
    %92 = math.exp %91 : vector<8x8xf32>
    %cst_55 = arith.constant dense<0.000000e+00> : vector<8xf32>
    %93 = vector.multi_reduction <add>, %92, %cst_55 [1] : vector<8x8xf32> to vector<8xf32>
    %94 = vector.shape_cast %93 : vector<8xf32> to vector<8x1xf32>
    %95 = tpu.reciprocal %94 {approx = true} : vector<8x1xf32> -> vector<8x1xf32>
    %96 = vector.broadcast %95 : vector<8x1xf32> to vector<8x8xf32>
    %97 = arith.mulf %92, %96 : vector<8x8xf32>
    %98 = arith.truncf %97 : vector<8x8xf32> to vector<8x8xbf16>
    %cst_56 = arith.constant dense<0.000000e+00> : vector<8x8xf32>
    %99 = tpu.matmul %98, %84, %cst_56 {dimension_numbers = #tpu.dot_dimension_numbers<[1], [0], [0], [1], [0, 0, 1, 1], [], []>} : vector<8x8xbf16>, vector<8x8xbf16>, vector<8x8xf32> -> vector<8x8xf32>
    %100 = arith.truncf %99 : vector<8x8xf32> to vector<8x8xbf16>
    %101 = vector.extract_strided_slice %3 {offsets = [16, 0], sizes = [8, 32], strides = [1, 1]} : vector<32x32xbf16> to vector<8x32xbf16>
    %cst_57 = arith.constant dense<0.000000e+00> : vector<8x32xf32>
    %102 = tpu.matmul %100, %101, %cst_57 {dimension_numbers = #tpu.dot_dimension_numbers<[1], [0], [0], [1], [0, 0, 1, 1], [], []>} : vector<8x8xbf16>, vector<8x32xbf16>, vector<8x32xf32> -> vector<8x32xf32>
    %103 = arith.addf %81, %102 : vector<8x32xf32>
    %104 = vector.extract_strided_slice %34 {offsets = [0, 24], sizes = [8, 8], strides = [1, 1]} : vector<8x32xbf16> to vector<8x8xbf16>
    %105 = vector.extract_strided_slice %35 {offsets = [0, 24], sizes = [8, 8], strides = [1, 1]} : vector<8x32xbf16> to vector<8x8xbf16>
    %106 = vector.extract_strided_slice %36 {offsets = [0, 24], sizes = [8, 8], strides = [1, 1]} : vector<8x32xbf16> to vector<8x8xbf16>
    "tpu.trace_start"() <{level = 10 : i32, message = "qd,kd->qk"}> : () -> ()
    %cst_58 = arith.constant dense<0.000000e+00> : vector<8x8xf32>
    %107 = tpu.matmul %104, %105, %cst_58 {dimension_numbers = #tpu.dot_dimension_numbers<[1], [1], [0], [0], [0, 0, 1, 0], [], []>} : vector<8x8xbf16>, vector<8x8xbf16>, vector<8x8xf32> -> vector<8x8xf32>
    "tpu.trace_stop"() : () -> ()
    %cst_59 = arith.constant 0.353553385 : f32
    %108 = vector.broadcast %cst_59 : f32 to vector<8x8xf32>
    %109 = arith.mulf %107, %108 : vector<8x8xf32>
    %cst_60 = arith.constant dense<0xFF800000> : vector<8xf32>
    %110 = vector.multi_reduction <maximumf>, %109, %cst_60 [1] : vector<8x8xf32> to vector<8xf32>
    %111 = vector.shape_cast %110 : vector<8xf32> to vector<8x1xf32>
    %112 = vector.broadcast %111 : vector<8x1xf32> to vector<8x8xf32>
    %113 = arith.subf %109, %112 : vector<8x8xf32>
    %114 = math.exp %113 : vector<8x8xf32>
    %cst_61 = arith.constant dense<0.000000e+00> : vector<8xf32>
    %115 = vector.multi_reduction <add>, %114, %cst_61 [1] : vector<8x8xf32> to vector<8xf32>
    %116 = vector.shape_cast %115 : vector<8xf32> to vector<8x1xf32>
    %117 = tpu.reciprocal %116 {approx = true} : vector<8x1xf32> -> vector<8x1xf32>
    %118 = vector.broadcast %117 : vector<8x1xf32> to vector<8x8xf32>
    %119 = arith.mulf %114, %118 : vector<8x8xf32>
    %120 = arith.truncf %119 : vector<8x8xf32> to vector<8x8xbf16>
    %cst_62 = arith.constant dense<0.000000e+00> : vector<8x8xf32>
    %121 = tpu.matmul %120, %106, %cst_62 {dimension_numbers = #tpu.dot_dimension_numbers<[1], [0], [0], [1], [0, 0, 1, 1], [], []>} : vector<8x8xbf16>, vector<8x8xbf16>, vector<8x8xf32> -> vector<8x8xf32>
    %122 = arith.truncf %121 : vector<8x8xf32> to vector<8x8xbf16>
    %123 = vector.extract_strided_slice %3 {offsets = [24, 0], sizes = [8, 32], strides = [1, 1]} : vector<32x32xbf16> to vector<8x32xbf16>
    %cst_63 = arith.constant dense<0.000000e+00> : vector<8x32xf32>
    %124 = tpu.matmul %122, %123, %cst_63 {dimension_numbers = #tpu.dot_dimension_numbers<[1], [0], [0], [1], [0, 0, 1, 1], [], []>} : vector<8x8xbf16>, vector<8x32xbf16>, vector<8x32xf32> -> vector<8x32xf32>
    %125 = arith.addf %103, %124 : vector<8x32xf32>
    %126 = vector.broadcast %9 : vector<1x32xf32> to vector<8x32xf32>
    %127 = arith.addf %125, %126 : vector<8x32xf32>
    %128 = arith.addf %17, %127 : vector<8x32xf32>
    %cst_64 = arith.constant dense<0.000000e+00> : vector<8xf32>
    %129 = vector.multi_reduction <add>, %128, %cst_64 [1] : vector<8x32xf32> to vector<8xf32>
    %130 = vector.shape_cast %129 : vector<8xf32> to vector<8x1xf32>
    %cst_65 = arith.constant 3.200000e+01 : f32
    %131 = vector.broadcast %cst_65 : f32 to vector<8x1xf32>
    %132 = arith.divf %130, %131 : vector<8x1xf32>
    %133 = vector.broadcast %132 : vector<8x1xf32> to vector<8x32xf32>
    %134 = arith.subf %128, %133 : vector<8x32xf32>
    %135 = arith.mulf %134, %134 : vector<8x32xf32>
    %cst_66 = arith.constant dense<0.000000e+00> : vector<8xf32>
    %136 = vector.multi_reduction <add>, %135, %cst_66 [1] : vector<8x32xf32> to vector<8xf32>
    %137 = vector.shape_cast %136 : vector<8xf32> to vector<8x1xf32>
    %cst_67 = arith.constant 3.200000e+01 : f32
    %138 = vector.broadcast %cst_67 : f32 to vector<8x1xf32>
    %139 = arith.divf %137, %138 : vector<8x1xf32>
    %140 = vector.broadcast %132 : vector<8x1xf32> to vector<8x32xf32>
    %141 = arith.subf %128, %140 : vector<8x32xf32>
    %cst_68 = arith.constant 9.99999974E-6 : f32
    %142 = vector.broadcast %cst_68 : f32 to vector<8x1xf32>
    %143 = arith.addf %139, %142 : vector<8x1xf32>
    %144 = math.rsqrt %143 : vector<8x1xf32>
    %145 = vector.broadcast %144 : vector<8x1xf32> to vector<8x32xf32>
    %146 = arith.mulf %141, %145 : vector<8x32xf32>
    %147 = vector.broadcast %12 : vector<1x32xf32> to vector<8x32xf32>
    %148 = arith.mulf %146, %147 : vector<8x32xf32>
    %149 = vector.broadcast %13 : vector<1x32xf32> to vector<8x32xf32>
    %150 = arith.addf %148, %149 : vector<8x32xf32>
    %151 = arith.truncf %150 : vector<8x32xf32> to vector<8x32xbf16>
    %cst_69 = arith.constant dense<0.000000e+00> : vector<8x64xf32>
    %152 = tpu.matmul %151, %4, %cst_69 {dimension_numbers = #tpu.dot_dimension_numbers<[1], [0], [0], [1], [0, 0, 1, 1], [], []>} : vector<8x32xbf16>, vector<32x64xbf16>, vector<8x64xf32> -> vector<8x64xf32>
    %153 = vector.broadcast %10 : vector<1x64xf32> to vector<8x64xf32>
    %154 = arith.addf %152, %153 : vector<8x64xf32>
    %cst_70 = arith.constant 5.000000e-01 : f32
    %155 = vector.broadcast %cst_70 : f32 to vector<8x64xf32>
    %156 = arith.mulf %155, %154 : vector<8x64xf32>
    %cst_71 = arith.constant 4.471500e-02 : f32
    %157 = vector.broadcast %cst_71 : f32 to vector<8x64xf32>
    %158 = arith.mulf %157, %154 : vector<8x64xf32>
    %159 = arith.mulf %158, %154 : vector<8x64xf32>
    %160 = arith.mulf %159, %154 : vector<8x64xf32>
    %161 = arith.addf %154, %160 : vector<8x64xf32>
    %cst_72 = arith.constant 0.797884583 : f32
    %162 = vector.broadcast %cst_72 : f32 to vector<8x64xf32>
    %163 = arith.mulf %162, %161 : vector<8x64xf32>
    %164 = math.tanh %163 : vector<8x64xf32>
    %cst_73 = arith.constant 1.000000e+00 : f32
    %165 = vector.broadcast %cst_73 : f32 to vector<8x64xf32>
    %166 = arith.addf %165, %164 : vector<8x64xf32>
    %167 = arith.mulf %156, %166 : vector<8x64xf32>
    %168 = arith.truncf %167 : vector<8x64xf32> to vector<8x64xbf16>
    %cst_74 = arith.constant dense<0.000000e+00> : vector<8x32xf32>
    %169 = tpu.matmul %168, %5, %cst_74 {dimension_numbers = #tpu.dot_dimension_numbers<[1], [0], [0], [1], [0, 0, 1, 1], [], []>} : vector<8x64xbf16>, vector<64x32xbf16>, vector<8x32xf32> -> vector<8x32xf32>
    %170 = vector.broadcast %11 : vector<1x32xf32> to vector<8x32xf32>
    %171 = arith.addf %169, %170 : vector<8x32xf32>
    %172 = arith.addf %150, %171 : vector<8x32xf32>
    %cst_75 = arith.constant dense<0.000000e+00> : vector<8xf32>
    %173 = vector.multi_reduction <add>, %172, %cst_75 [1] : vector<8x32xf32> to vector<8xf32>
    %174 = vector.shape_cast %173 : vector<8xf32> to vector<8x1xf32>
    %cst_76 = arith.constant 3.200000e+01 : f32
    %175 = vector.broadcast %cst_76 : f32 to vector<8x1xf32>
    %176 = arith.divf %174, %175 : vector<8x1xf32>
    %177 = vector.broadcast %176 : vector<8x1xf32> to vector<8x32xf32>
    %178 = arith.subf %172, %177 : vector<8x32xf32>
    %179 = arith.mulf %178, %178 : vector<8x32xf32>
    %cst_77 = arith.constant dense<0.000000e+00> : vector<8xf32>
    %180 = vector.multi_reduction <add>, %179, %cst_77 [1] : vector<8x32xf32> to vector<8xf32>
    %181 = vector.shape_cast %180 : vector<8xf32> to vector<8x1xf32>
    %cst_78 = arith.constant 3.200000e+01 : f32
    %182 = vector.broadcast %cst_78 : f32 to vector<8x1xf32>
    %183 = arith.divf %181, %182 : vector<8x1xf32>
    %184 = vector.broadcast %176 : vector<8x1xf32> to vector<8x32xf32>
    %185 = arith.subf %172, %184 : vector<8x32xf32>
    %cst_79 = arith.constant 9.99999974E-6 : f32
    %186 = vector.broadcast %cst_79 : f32 to vector<8x1xf32>
    %187 = arith.addf %183, %186 : vector<8x1xf32>
    %188 = math.rsqrt %187 : vector<8x1xf32>
    %189 = vector.broadcast %188 : vector<8x1xf32> to vector<8x32xf32>
    %190 = arith.mulf %185, %189 : vector<8x32xf32>
    %191 = vector.broadcast %14 : vector<1x32xf32> to vector<8x32xf32>
    %192 = arith.mulf %190, %191 : vector<8x32xf32>
    %193 = vector.broadcast %15 : vector<1x32xf32> to vector<8x32xf32>
    %194 = arith.addf %192, %193 : vector<8x32xf32>
    %c0_80 = arith.constant 0 : index
    %c0_81 = arith.constant 0 : index
    %c0_82 = arith.constant 0 : index
    %195 = vector.load %arg20[%c0_80, %c0_81, %c0_82] : memref<1x8x32xf32, #tpu.memory_space<vmem>>, vector<1x8x32xf32>
    %196 = vector.shape_cast %195 : vector<1x8x32xf32> to vector<8x32xf32>
    %197 = vector.shape_cast %194 : vector<8x32xf32> to vector<1x8x32xf32>
    tpu.vector_store %arg20[%c0_80, %c0_81, %c0_82], %197 {strides = array<i32>} : memref<1x8x32xf32, #tpu.memory_space<vmem>>, vector<1x8x32xf32>,
    return
  }
  func.func @transform_0(%arg0: i32, %arg1: i32) -> (i32, i32, i32) {
    %c0_i32 = arith.constant 0 : i32
    %c0_i32_0 = arith.constant 0 : i32
    %c0_i32_1 = arith.constant 0 : i32
    return %arg0, %c0_i32, %c0_i32_0 : i32, i32, i32
  }
  func.func @transform_1(%arg0: i32, %arg1: i32) -> (i32, i32, i32) {
    %c0_i32 = arith.constant 0 : i32
    %c0_i32_0 = arith.constant 0 : i32
    %c0_i32_1 = arith.constant 0 : i32
    return %arg0, %c0_i32, %c0_i32_0 : i32, i32, i32
  }
  func.func @transform_2(%arg0: i32, %arg1: i32) -> (i32, i32) {
    %c0_i32 = arith.constant 0 : i32
    %c0_i32_0 = arith.constant 0 : i32
    %c0_i32_1 = arith.constant 0 : i32
    return %c0_i32, %c0_i32_0 : i32, i32
  }
  func.func @transform_3(%arg0: i32, %arg1: i32) -> (i32, i32) {
    %c0_i32 = arith.constant 0 : i32
    %c0_i32_0 = arith.constant 0 : i32
    %c0_i32_1 = arith.constant 0 : i32
    return %c0_i32, %c0_i32_0 : i32, i32
  }
  func.func @transform_4(%arg0: i32, %arg1: i32) -> (i32, i32) {
    %c0_i32 = arith.constant 0 : i32
    %c0_i32_0 = arith.constant 0 : i32
    %c0_i32_1 = arith.constant 0 : i32
    return %c0_i32, %c0_i32_0 : i32, i32
  }
  func.func @transform_5(%arg0: i32, %arg1: i32) -> (i32, i32) {
    %c0_i32 = arith.constant 0 : i32
    %c0_i32_0 = arith.constant 0 : i32
    %c0_i32_1 = arith.constant 0 : i32
    return %c0_i32, %c0_i32_0 : i32, i32
  }
  func.func @transform_6(%arg0: i32, %arg1: i32) -> (i32, i32) {
    %c0_i32 = arith.constant 0 : i32
    %c0_i32_0 = arith.constant 0 : i32
    %c0_i32_1 = arith.constant 0 : i32
    return %c0_i32, %c0_i32_0 : i32, i32
  }
  func.func @transform_7(%arg0: i32, %arg1: i32) -> (i32, i32) {
    %c0_i32 = arith.constant 0 : i32
    %c0_i32_0 = arith.constant 0 : i32
    %c0_i32_1 = arith.constant 0 : i32
    return %c0_i32, %c0_i32_0 : i32, i32
  }
  func.func @transform_8(%arg0: i32, %arg1: i32) -> (i32, i32) {
    %c0_i32 = arith.constant 0 : i32
    %c0_i32_0 = arith.constant 0 : i32
    %c0_i32_1 = arith.constant 0 : i32
    return %c0_i32, %c0_i32_0 : i32, i32
  }
  func.func @transform_9(%arg0: i32, %arg1: i32) -> (i32, i32) {
    %c0_i32 = arith.constant 0 : i32
    %c0_i32_0 = arith.constant 0 : i32
    %c0_i32_1 = arith.constant 0 : i32
    return %c0_i32, %c0_i32_0 : i32, i32
  }
  func.func @transform_10(%arg0: i32, %arg1: i32) -> (i32, i32) {
    %c0_i32 = arith.constant 0 : i32
    %c0_i32_0 = arith.constant 0 : i32
    %c0_i32_1 = arith.constant 0 : i32
    return %c0_i32, %c0_i32_0 : i32, i32
  }
  func.func @transform_11(%arg0: i32, %arg1: i32) -> (i32, i32) {
    %c0_i32 = arith.constant 0 : i32
    %c0_i32_0 = arith.constant 0 : i32
    %c0_i32_1 = arith.constant 0 : i32
    return %c0_i32, %c0_i32_0 : i32, i32
  }
  func.func @transform_12(%arg0: i32, %arg1: i32) -> (i32, i32) {
    %c0_i32 = arith.constant 0 : i32
    %c0_i32_0 = arith.constant 0 : i32
    %c0_i32_1 = arith.constant 0 : i32
    return %c0_i32, %c0_i32_0 : i32, i32
  }
  func.func @transform_13(%arg0: i32, %arg1: i32) -> (i32, i32) {
    %c0_i32 = arith.constant 0 : i32
    %c0_i32_0 = arith.constant 0 : i32
    %c0_i32_1 = arith.constant 0 : i32
    return %c0_i32, %c0_i32_0 : i32, i32
  }
  func.func @transform_14(%arg0: i32, %arg1: i32) -> (i32, i32) {
    %c0_i32 = arith.constant 0 : i32
    %c0_i32_0 = arith.constant 0 : i32
    %c0_i32_1 = arith.constant 0 : i32
    return %c0_i32, %c0_i32_0 : i32, i32
  }
  func.func @transform_15(%arg0: i32, %arg1: i32) -> (i32, i32) {
    %c0_i32 = arith.constant 0 : i32
    %c0_i32_0 = arith.constant 0 : i32
    %c0_i32_1 = arith.constant 0 : i32
    return %c0_i32, %c0_i32_0 : i32, i32
  }
  func.func @transform_16(%arg0: i32, %arg1: i32) -> (i32, i32) {
    %c0_i32 = arith.constant 0 : i32
    %c0_i32_0 = arith.constant 0 : i32
    %c0_i32_1 = arith.constant 0 : i32
    return %c0_i32, %c0_i32_0 : i32, i32
  }
  func.func @transform_17(%arg0: i32, %arg1: i32) -> (i32, i32) {
    %c0_i32 = arith.constant 0 : i32
    %c0_i32_0 = arith.constant 0 : i32
    %c0_i32_1 = arith.constant 0 : i32
    return %c0_i32, %c0_i32_0 : i32, i32
  }
  func.func @transform_18(%arg0: i32, %arg1: i32) -> (i32, i32, i32) {
    %c0_i32 = arith.constant 0 : i32
    %c0_i32_0 = arith.constant 0 : i32
    return %arg0, %arg1, %c0_i32 : i32, i32, i32
  }
}

</mosaic_0001>

<llo_original>
// kernel: tpu_custom_call.1
$region0: #{tpu_custom_call.1}
  #allocation0 [shape = 'u32[]', space=smem, size = 0x4, offset = 0x4, fixed_abs, tag = 'smem constant byte address 0x4 - core index']
  #allocation1 [shape = 'u32[144,128]{1,0:T(1,128)}', space=vmem, size = 0x12000, scoped, tag = 'internal scratch']
  %s0 = inlined_call_operand.vmem [shape: f32[2,8,32], index: 0, kind: input, shape index: {}]
  %s1 = inlined_call_operand.vmem [shape: f32[2,8,32], index: 1, kind: input, shape index: {}]
  %s2 = inlined_call_operand.vmem [shape: bf16[32,32], index: 2, kind: input, shape index: {}]
  %s3 = inlined_call_operand.hbm [shape: bf16[32,32], index: 3, kind: input, shape index: {}]
  %s4 = inlined_call_operand.hbm [shape: bf16[32,32], index: 4, kind: input, shape index: {}]
  %s5 = inlined_call_operand.hbm [shape: f32[1,32], index: 5, kind: input, shape index: {}]
  %s6 = inlined_call_operand.hbm [shape: f32[1,32], index: 6, kind: input, shape index: {}]
  %s7 = inlined_call_operand.hbm [shape: f32[1,32], index: 7, kind: input, shape index: {}]
  %s8 = inlined_call_operand.hbm [shape: bf16[32,32], index: 8, kind: input, shape index: {}]
  %s9 = inlined_call_operand.hbm [shape: f32[1,32], index: 9, kind: input, shape index: {}]
  %s10 = inlined_call_operand.vmem [shape: bf16[32,64], index: 10, kind: input, shape index: {}]
  %s11 = inlined_call_operand.vmem [shape: f32[1,64], index: 11, kind: input, shape index: {}]
  %s12 = inlined_call_operand.vmem [shape: bf16[64,32], index: 12, kind: input, shape index: {}]
  %s13 = inlined_call_operand.vmem [shape: f32[1,32], index: 13, kind: input, shape index: {}]
  %s14 = inlined_call_operand.vmem [shape: f32[1,32], index: 14, kind: input, shape index: {}]
  %s15 = inlined_call_operand.vmem [shape: f32[1,32], index: 15, kind: input, shape index: {}]
  %s16 = inlined_call_operand.vmem [shape: f32[1,32], index: 16, kind: input, shape index: {}]
  %s17 = inlined_call_operand.vmem [shape: f32[1,32], index: 17, kind: input, shape index: {}]
  %s18 = inlined_call_operand.hbm [shape: f32[2,8,32], index: 18, kind: output, shape index: {}]
  %s19 = sld [smem:[#allocation0]]
  $region133: #{tpu_custom_call.1} parent=0
    _
  %s21 = ssub.s32 1, %s19
  %s22 = scalar_select 0, %s21, %s19
  $region1: #{tpu_custom_call.1} parent=0
    #allocation2 [shape = 'u8[8192]{0}', space=vmem, size = 0x2000, scoped, tag = 'input window, operand 3, single buffered']
    #allocation3 [shape = 's32[2]{0}', space=sflag, size = 0x8, scoped, tag = 'scoped memory for tpu_custom_call.1']
    #allocation4 [shape = 's32[2]{0}', space=sflag, size = 0x8, scoped, tag = 'scoped memory for tpu_custom_call.1']
    #allocation5 [shape = 'u8[8192]{0}', space=vmem, size = 0x2000, scoped, tag = 'input window, operand 4, single buffered']
    #allocation6 [shape = 's32[1]{0}', space=sflag, size = 0x4, scoped, tag = 'scoped memory for tpu_custom_call.1']
    #allocation7 [shape = 'u8[512]{0}', space=vmem, size = 0x400, scoped, tag = 'input window, operand 5, single buffered']
    #allocation8 [shape = 'u8[512]{0}', space=vmem, size = 0x400, scoped, tag = 'input window, operand 6, single buffered']
    #allocation9 [shape = 's32[1]{0}', space=sflag, size = 0x4, scoped, tag = 'scoped memory for tpu_custom_call.1']
    #allocation10 [shape = 'u8[512]{0}', space=vmem, size = 0x400, scoped, tag = 'input window, operand 7, single buffered']
    #allocation11 [shape = 'u8[8192]{0}', space=vmem, size = 0x2000, scoped, tag = 'input window, operand 8, single buffered']
    #allocation12 [shape = 's32[1]{0}', space=sflag, size = 0x4, scoped, tag = 'scoped memory for tpu_custom_call.1']
    #allocation13 [shape = 'u8[512]{0}', space=vmem, size = 0x400, scoped, tag = 'input window, operand 9, single buffered']
    #allocation14 [shape = 'u8[8192]{0}', space=vmem, size = 0x2000, scoped, tag = 'output window, operand 0']
    %23 = vsyncpa [#allocation3], 0
    %24 = vsyncpa [#allocation6], 0
    %25 = vsyncpa [#allocation9], 0
    %26 = vsyncpa [#allocation12], 0
    %27 = vsyncpa [#allocation4], 0
    %s28 = scalar_lea.sflag [#allocation4], 1
    %29 = vsyncpa %s28, 0
    loop: start=0, step=1, limit=4
    $region2: #{tpu_custom_call.1} parent=1 // loop_pre_header
      _
    $region3: #{tpu_custom_call.1} parent=1 // loop_header
      %s31 = sphi 0, %s35
      %p32 = scmp.ge.s32.totalorder %s31, 4
      %s38 = sphi 0, %s50
      %s39 = sphi 0, %s46
      %s40 = sphi 0, %s38
      %s41 = sphi 0, %s39
      %s42 = sphi 0, %s40
      %s43 = sphi 0, %s41
      %s53 = sphi 0, %s55
      %s56 = sphi 0, %s53
      %s57 = sphi 0, %s56
      %s73 = sphi 0, %s57
      %s79 = sphi 0, %s81
      %s82 = sphi 0, %s79
      %s83 = sphi 0, %s82
      %s99 = sphi 0, %s83
      %s103 = sphi 0, %s103
      %s105 = sphi 0, %s103
      %s106 = sphi 0, %s105
      %s120 = sphi 0, %s106
      %s124 = sphi 0, %s124
      %s126 = sphi 0, %s124
      %s127 = sphi 0, %s126
      %s141 = sphi 0, %s127
      %s145 = sphi 0, %s145
      %s147 = sphi 0, %s145
      %s148 = sphi 0, %s147
      %s162 = sphi 0, %s148
      %s166 = sphi 0, %s166
      %s168 = sphi 0, %s166
      %s169 = sphi 0, %s168
      %s183 = sphi 0, %s169
      %s187 = sphi 0, %s187
      %s189 = sphi 0, %s187
      %s190 = sphi 0, %s189
      %s204 = sphi 0, %s190
      %s208 = sphi 0, %s208
      %s210 = sphi 0, %s208
      %s211 = sphi 0, %s210
      %s225 = sphi 0, %s211
      %s229 = sphi 0, %s229
      %s231 = sphi 0, %s229
      %s232 = sphi 0, %s231
      %s246 = sphi 0, %s232
      %s250 = sphi 0, %s250
      %s252 = sphi 0, %s250
      %s253 = sphi 0, %s252
      %s267 = sphi 0, %s253
      %s271 = sphi 0, %s271
      %s273 = sphi 0, %s271
      %s274 = sphi 0, %s273
      %s288 = sphi 0, %s274
      %s292 = sphi 0, %s292
      %s294 = sphi 0, %s292
      %s295 = sphi 0, %s294
      %s309 = sphi 0, %s295
      %s313 = sphi 0, %s313
      %s315 = sphi 0, %s313
      %s316 = sphi 0, %s315
      %s330 = sphi 0, %s316
      %s334 = sphi 0, %s334
      %s336 = sphi 0, %s334
      %s337 = sphi 0, %s336
      %s351 = sphi 0, %s337
      %s355 = sphi 0, %s355
      %s357 = sphi 0, %s355
      %s358 = sphi 0, %s357
      %s372 = sphi 0, %s358
      %s376 = sphi 0, %s376
      %s378 = sphi 0, %s376
      %s379 = sphi 0, %s378
      %s393 = sphi 0, %s379
      %s397 = sphi 0, %s397
      %s399 = sphi 0, %s397
      %s400 = sphi 0, %s399
      %s414 = sphi 0, %s400
      %s418 = sphi 0, %s418
      %s420 = sphi 0, %s418
      %s421 = sphi 0, %s420
      %s435 = sphi 0, %s421
      %s443 = sphi 0, %s445
      %s446 = sphi 0, %s443
      %s447 = sphi 0, %s446
      %s463 = sphi 0, %s447
    $region4: #{tpu_custom_call.1} parent=1 // loop_header_branch
      %34 = sbr.rel (%p32) target = $region8
    $region5: #{tpu_custom_call.1} parent=1 // loop_body
      %s36 = ssub.s32 %s31, 1
      %s37 = ssub.s32 %s31, 2
      %s44 = sadd.s32 1, %s39
      %p45 = scmp.ge.s32.totalorder %s44, 1
      %s46 = scalar_select %p45, 0, %s44
      %s47 = sadd.s32 1, %s38
      %s48 = scalar_select %p45, %s47, %s38
      %p49 = scmp.ge.s32.totalorder %s48, 2
      %s50 = scalar_select %p49, 0, %s48
      %s51 = ssub.s32 %s38, %s50
      %p52 = scmp.eq.s32.totalorder %s51, 0
      %s54 = sadd.s32 %s53, 1
      %s55 = scalar_select %p52, %s53, %s54
      %p58 = pneg %p52
      %p59 = scmp.eq.s32.totalorder %s31, 1
      %p60 = por %p58, %p59
      %p61 = scmp.ne.s32.totalorder %s53, %s56
      %p62 = scmp.eq.s32.totalorder %s31, 0
      %p63 = por %p61, %p62
      %p64 = scmp.ne.s32.totalorder %s53, %s56
      %p65 = scmp.eq.s32.totalorder %s36, 1
      %p66 = por %p64, %p65
      %p67 = scmp.ne.s32.totalorder %s56, %s57
      %p68 = scmp.eq.s32.totalorder %s36, 0
      %p69 = por %p67, %p68
      %p70 = scmp.ne.s32.totalorder %s56, %s57
      %p71 = scmp.eq.s32.totalorder %s37, 1
      %p72 = por %p70, %p71
      %p74 = scmp.ne.s32.totalorder %s57, %s73
      %p75 = scmp.eq.s32.totalorder %s37, 0
      %p76 = por %p74, %p75
      %s77 = ssub.s32 %s38, %s50
      %p78 = scmp.eq.s32.totalorder %s77, 0
      %s80 = sadd.s32 %s79, 1
      %s81 = scalar_select %p78, %s79, %s80
      %p84 = pneg %p78
      %p85 = scmp.eq.s32.totalorder %s31, 1
      %p86 = por %p84, %p85
      %p87 = scmp.ne.s32.totalorder %s79, %s82
      %p88 = scmp.eq.s32.totalorder %s31, 0
      %p89 = por %p87, %p88
      %p90 = scmp.ne.s32.totalorder %s79, %s82
      %p91 = scmp.eq.s32.totalorder %s36, 1
      %p92 = por %p90, %p91
      %p93 = scmp.ne.s32.totalorder %s82, %s83
      %p94 = scmp.eq.s32.totalorder %s36, 0
      %p95 = por %p93, %p94
      %p96 = scmp.ne.s32.totalorder %s82, %s83
      %p97 = scmp.eq.s32.totalorder %s37, 1
      %p98 = por %p96, %p97
      %p100 = scmp.ne.s32.totalorder %s83, %s99
      %p101 = scmp.eq.s32.totalorder %s37, 0
      %p102 = por %p100, %p101
      %s104 = sadd.s32 %s103, 1
      %p107 = scmp.eq.s32.totalorder %s31, 1
      %p108 = scmp.ne.s32.totalorder %s103, %s105
      %p109 = scmp.eq.s32.totalorder %s31, 0
      %p110 = por %p108, %p109
      %p111 = scmp.ne.s32.totalorder %s103, %s105
      %p112 = scmp.eq.s32.totalorder %s36, 1
      %p113 = por %p111, %p112
      %p114 = scmp.ne.s32.totalorder %s105, %s106
      %p115 = scmp.eq.s32.totalorder %s36, 0
      %p116 = por %p114, %p115
      %p117 = scmp.ne.s32.totalorder %s105, %s106
      %p118 = scmp.eq.s32.totalorder %s37, 1
      %p119 = por %p117, %p118
      %p121 = scmp.ne.s32.totalorder %s106, %s120
      %p122 = scmp.eq.s32.totalorder %s37, 0
      %p123 = por %p121, %p122
      %s125 = sadd.s32 %s124, 1
      %p128 = scmp.eq.s32.totalorder %s31, 1
      %p129 = scmp.ne.s32.totalorder %s124, %s126
      %p130 = scmp.eq.s32.totalorder %s31, 0
      %p131 = por %p129, %p130
      %p132 = scmp.ne.s32.totalorder %s124, %s126
      %p133 = scmp.eq.s32.totalorder %s36, 1
      %p134 = por %p132, %p133
      %p135 = scmp.ne.s32.totalorder %s126, %s127
      %p136 = scmp.eq.s32.totalorder %s36, 0
      %p137 = por %p135, %p136
      %p138 = scmp.ne.s32.totalorder %s126, %s127
      %p139 = scmp.eq.s32.totalorder %s37, 1
      %p140 = por %p138, %p139
      %p142 = scmp.ne.s32.totalorder %s127, %s141
      %p143 = scmp.eq.s32.totalorder %s37, 0
      %p144 = por %p142, %p143
      %s146 = sadd.s32 %s145, 1
      %p149 = scmp.eq.s32.totalorder %s31, 1
      %p150 = scmp.ne.s32.totalorder %s145, %s147
      %p151 = scmp.eq.s32.totalorder %s31, 0
      %p152 = por %p150, %p151
      %p153 = scmp.ne.s32.totalorder %s145, %s147
      %p154 = scmp.eq.s32.totalorder %s36, 1
      %p155 = por %p153, %p154
      %p156 = scmp.ne.s32.totalorder %s147, %s148
      %p157 = scmp.eq.s32.totalorder %s36, 0
      %p158 = por %p156, %p157
      %p159 = scmp.ne.s32.totalorder %s147, %s148
      %p160 = scmp.eq.s32.totalorder %s37, 1
      %p161 = por %p159, %p160
      %p163 = scmp.ne.s32.totalorder %s148, %s162
      %p164 = scmp.eq.s32.totalorder %s37, 0
      %p165 = por %p163, %p164
      %s167 = sadd.s32 %s166, 1
      %p170 = scmp.eq.s32.totalorder %s31, 1
      %p171 = scmp.ne.s32.totalorder %s166, %s168
      %p172 = scmp.eq.s32.totalorder %s31, 0
      %p173 = por %p171, %p172
      %p174 = scmp.ne.s32.totalorder %s166, %s168
      %p175 = scmp.eq.s32.totalorder %s36, 1
      %p176 = por %p174, %p175
      %p177 = scmp.ne.s32.totalorder %s168, %s169
      %p178 = scmp.eq.s32.totalorder %s36, 0
      %p179 = por %p177, %p178
      %p180 = scmp.ne.s32.totalorder %s168, %s169
      %p181 = scmp.eq.s32.totalorder %s37, 1
      %p182 = por %p180, %p181
      %p184 = scmp.ne.s32.totalorder %s169, %s183
      %p185 = scmp.eq.s32.totalorder %s37, 0
      %p186 = por %p184, %p185
      %s188 = sadd.s32 %s187, 1
      %p191 = scmp.eq.s32.totalorder %s31, 1
      %p192 = scmp.ne.s32.totalorder %s187, %s189
      %p193 = scmp.eq.s32.totalorder %s31, 0
      %p194 = por %p192, %p193
      %p195 = scmp.ne.s32.totalorder %s187, %s189
      %p196 = scmp.eq.s32.totalorder %s36, 1
      %p197 = por %p195, %p196
      %p198 = scmp.ne.s32.totalorder %s189, %s190
      %p199 = scmp.eq.s32.totalorder %s36, 0
      %p200 = por %p198, %p199
      %p201 = scmp.ne.s32.totalorder %s189, %s190
      %p202 = scmp.eq.s32.totalorder %s37, 1
      %p203 = por %p201, %p202
      %p205 = scmp.ne.s32.totalorder %s190, %s204
      %p206 = scmp.eq.s32.totalorder %s37, 0
      %p207 = por %p205, %p206
      %s209 = sadd.s32 %s208, 1
      %p212 = scmp.eq.s32.totalorder %s31, 1
      %p213 = scmp.ne.s32.totalorder %s208, %s210
      %p214 = scmp.eq.s32.totalorder %s31, 0
      %p215 = por %p213, %p214
      %p216 = scmp.ne.s32.totalorder %s208, %s210
      %p217 = scmp.eq.s32.totalorder %s36, 1
      %p218 = por %p216, %p217
      %p219 = scmp.ne.s32.totalorder %s210, %s211
      %p220 = scmp.eq.s32.totalorder %s36, 0
      %p221 = por %p219, %p220
      %p222 = scmp.ne.s32.totalorder %s210, %s211
      %p223 = scmp.eq.s32.totalorder %s37, 1
      %p224 = por %p222, %p223
      %p226 = scmp.ne.s32.totalorder %s211, %s225
      %p227 = scmp.eq.s32.totalorder %s37, 0
      %p228 = por %p226, %p227
      %s230 = sadd.s32 %s229, 1
      %p233 = scmp.eq.s32.totalorder %s31, 1
      %p234 = scmp.ne.s32.totalorder %s229, %s231
      %p235 = scmp.eq.s32.totalorder %s31, 0
      %p236 = por %p234, %p235
      %p237 = scmp.ne.s32.totalorder %s229, %s231
      %p238 = scmp.eq.s32.totalorder %s36, 1
      %p239 = por %p237, %p238
      %p240 = scmp.ne.s32.totalorder %s231, %s232
      %p241 = scmp.eq.s32.totalorder %s36, 0
      %p242 = por %p240, %p241
      %p243 = scmp.ne.s32.totalorder %s231, %s232
      %p244 = scmp.eq.s32.totalorder %s37, 1
      %p245 = por %p243, %p244
      %p247 = scmp.ne.s32.totalorder %s232, %s246
      %p248 = scmp.eq.s32.totalorder %s37, 0
      %p249 = por %p247, %p248
      %s251 = sadd.s32 %s250, 1
      %p254 = scmp.eq.s32.totalorder %s31, 1
      %p255 = scmp.ne.s32.totalorder %s250, %s252
      %p256 = scmp.eq.s32.totalorder %s31, 0
      %p257 = por %p255, %p256
      %p258 = scmp.ne.s32.totalorder %s250, %s252
      %p259 = scmp.eq.s32.totalorder %s36, 1
      %p260 = por %p258, %p259
      %p261 = scmp.ne.s32.totalorder %s252, %s253
      %p262 = scmp.eq.s32.totalorder %s36, 0
      %p263 = por %p261, %p262
      %p264 = scmp.ne.s32.totalorder %s252, %s253
      %p265 = scmp.eq.s32.totalorder %s37, 1
      %p266 = por %p264, %p265
      %p268 = scmp.ne.s32.totalorder %s253, %s267
      %p269 = scmp.eq.s32.totalorder %s37, 0
      %p270 = por %p268, %p269
      %s272 = sadd.s32 %s271, 1
      %p275 = scmp.eq.s32.totalorder %s31, 1
      %p276 = scmp.ne.s32.totalorder %s271, %s273
      %p277 = scmp.eq.s32.totalorder %s31, 0
      %p278 = por %p276, %p277
      %p279 = scmp.ne.s32.totalorder %s271, %s273
      %p280 = scmp.eq.s32.totalorder %s36, 1
      %p281 = por %p279, %p280
      %p282 = scmp.ne.s32.totalorder %s273, %s274
      %p283 = scmp.eq.s32.totalorder %s36, 0
      %p284 = por %p282, %p283
      %p285 = scmp.ne.s32.totalorder %s273, %s274
      %p286 = scmp.eq.s32.totalorder %s37, 1
      %p287 = por %p285, %p286
      %p289 = scmp.ne.s32.totalorder %s274, %s288
      %p290 = scmp.eq.s32.totalorder %s37, 0
      %p291 = por %p289, %p290
      %s293 = sadd.s32 %s292, 1
      %p296 = scmp.eq.s32.totalorder %s31, 1
      %p297 = scmp.ne.s32.totalorder %s292, %s294
      %p298 = scmp.eq.s32.totalorder %s31, 0
      %p299 = por %p297, %p298
      %p300 = scmp.ne.s32.totalorder %s292, %s294
      %p301 = scmp.eq.s32.totalorder %s36, 1
      %p302 = por %p300, %p301
      %p303 = scmp.ne.s32.totalorder %s294, %s295
      %p304 = scmp.eq.s32.totalorder %s36, 0
      %p305 = por %p303, %p304
      %p306 = scmp.ne.s32.totalorder %s294, %s295
      %p307 = scmp.eq.s32.totalorder %s37, 1
      %p308 = por %p306, %p307
      %p310 = scmp.ne.s32.totalorder %s295, %s309
      %p311 = scmp.eq.s32.totalorder %s37, 0
      %p312 = por %p310, %p311
      %s314 = sadd.s32 %s313, 1
      %p317 = scmp.eq.s32.totalorder %s31, 1
      %p318 = scmp.ne.s32.totalorder %s313, %s315
      %p319 = scmp.eq.s32.totalorder %s31, 0
      %p320 = por %p318, %p319
      %p321 = scmp.ne.s32.totalorder %s313, %s315
      %p322 = scmp.eq.s32.totalorder %s36, 1
      %p323 = por %p321, %p322
      %p324 = scmp.ne.s32.totalorder %s315, %s316
      %p325 = scmp.eq.s32.totalorder %s36, 0
      %p326 = por %p324, %p325
      %p327 = scmp.ne.s32.totalorder %s315, %s316
      %p328 = scmp.eq.s32.totalorder %s37, 1
      %p329 = por %p327, %p328
      %p331 = scmp.ne.s32.totalorder %s316, %s330
      %p332 = scmp.eq.s32.totalorder %s37, 0
      %p333 = por %p331, %p332
      %s335 = sadd.s32 %s334, 1
      %p338 = scmp.eq.s32.totalorder %s31, 1
      %p339 = scmp.ne.s32.totalorder %s334, %s336
      %p340 = scmp.eq.s32.totalorder %s31, 0
      %p341 = por %p339, %p340
      %p342 = scmp.ne.s32.totalorder %s334, %s336
      %p343 = scmp.eq.s32.totalorder %s36, 1
      %p344 = por %p342, %p343
      %p345 = scmp.ne.s32.totalorder %s336, %s337
      %p346 = scmp.eq.s32.totalorder %s36, 0
      %p347 = por %p345, %p346
      %p348 = scmp.ne.s32.totalorder %s336, %s337
      %p349 = scmp.eq.s32.totalorder %s37, 1
      %p350 = por %p348, %p349
      %p352 = scmp.ne.s32.totalorder %s337, %s351
      %p353 = scmp.eq.s32.totalorder %s37, 0
      %p354 = por %p352, %p353
      %s356 = sadd.s32 %s355, 1
      %p359 = scmp.eq.s32.totalorder %s31, 1
      %p360 = scmp.ne.s32.totalorder %s355, %s357
      %p361 = scmp.eq.s32.totalorder %s31, 0
      %p362 = por %p360, %p361
      %p363 = scmp.ne.s32.totalorder %s355, %s357
      %p364 = scmp.eq.s32.totalorder %s36, 1
      %p365 = por %p363, %p364
      %p366 = scmp.ne.s32.totalorder %s357, %s358
      %p367 = scmp.eq.s32.totalorder %s36, 0
      %p368 = por %p366, %p367
      %p369 = scmp.ne.s32.totalorder %s357, %s358
      %p370 = scmp.eq.s32.totalorder %s37, 1
      %p371 = por %p369, %p370
      %p373 = scmp.ne.s32.totalorder %s358, %s372
      %p374 = scmp.eq.s32.totalorder %s37, 0
      %p375 = por %p373, %p374
      %s377 = sadd.s32 %s376, 1
      %p380 = scmp.eq.s32.totalorder %s31, 1
      %p381 = scmp.ne.s32.totalorder %s376, %s378
      %p382 = scmp.eq.s32.totalorder %s31, 0
      %p383 = por %p381, %p382
      %p384 = scmp.ne.s32.totalorder %s376, %s378
      %p385 = scmp.eq.s32.totalorder %s36, 1
      %p386 = por %p384, %p385
      %p387 = scmp.ne.s32.totalorder %s378, %s379
      %p388 = scmp.eq.s32.totalorder %s36, 0
      %p389 = por %p387, %p388
      %p390 = scmp.ne.s32.totalorder %s378, %s379
      %p391 = scmp.eq.s32.totalorder %s37, 1
      %p392 = por %p390, %p391
      %p394 = scmp.ne.s32.totalorder %s379, %s393
      %p395 = scmp.eq.s32.totalorder %s37, 0
      %p396 = por %p394, %p395
      %s398 = sadd.s32 %s397, 1
      %p401 = scmp.eq.s32.totalorder %s31, 1
      %p402 = scmp.ne.s32.totalorder %s397, %s399
      %p403 = scmp.eq.s32.totalorder %s31, 0
      %p404 = por %p402, %p403
      %p405 = scmp.ne.s32.totalorder %s397, %s399
      %p406 = scmp.eq.s32.totalorder %s36, 1
      %p407 = por %p405, %p406
      %p408 = scmp.ne.s32.totalorder %s399, %s400
      %p409 = scmp.eq.s32.totalorder %s36, 0
      %p410 = por %p408, %p409
      %p411 = scmp.ne.s32.totalorder %s399, %s400
      %p412 = scmp.eq.s32.totalorder %s37, 1
      %p413 = por %p411, %p412
      %p415 = scmp.ne.s32.totalorder %s400, %s414
      %p416 = scmp.eq.s32.totalorder %s37, 0
      %p417 = por %p415, %p416
      %s419 = sadd.s32 %s418, 1
      %p422 = scmp.eq.s32.totalorder %s31, 1
      %p423 = scmp.ne.s32.totalorder %s418, %s420
      %p424 = scmp.eq.s32.totalorder %s31, 0
      %p425 = por %p423, %p424
      %p426 = scmp.ne.s32.totalorder %s418, %s420
      %p427 = scmp.eq.s32.totalorder %s36, 1
      %p428 = por %p426, %p427
      %p429 = scmp.ne.s32.totalorder %s420, %s421
      %p430 = scmp.eq.s32.totalorder %s36, 0
      %p431 = por %p429, %p430
      %p432 = scmp.ne.s32.totalorder %s420, %s421
      %p433 = scmp.eq.s32.totalorder %s37, 1
      %p434 = por %p432, %p433
      %p436 = scmp.ne.s32.totalorder %s421, %s435
      %p437 = scmp.eq.s32.totalorder %s37, 0
      %p438 = por %p436, %p437
      %s439 = ssub.s32 %s38, %s50
      %s440 = ssub.s32 %s39, %s46
      %s441 = sor.u32 %s439, %s440
      %p442 = scmp.eq.s32.totalorder %s441, 0
      %s444 = sadd.s32 %s443, 1
      %s445 = scalar_select %p442, %s443, %s444
      %p448 = pneg %p442
      %p449 = scmp.eq.s32.totalorder %s31, 1
      %p450 = por %p448, %p449
      %p451 = scmp.ne.s32.totalorder %s443, %s446
      %p452 = scmp.eq.s32.totalorder %s31, 0
      %p453 = por %p451, %p452
      %p454 = scmp.ne.s32.totalorder %s443, %s446
      %p455 = scmp.eq.s32.totalorder %s36, 1
      %p456 = por %p454, %p455
      %p457 = scmp.ne.s32.totalorder %s446, %s447
      %p458 = scmp.eq.s32.totalorder %s36, 0
      %p459 = por %p457, %p458
      %p460 = scmp.ne.s32.totalorder %s446, %s447
      %p461 = scmp.eq.s32.totalorder %s37, 1
      %p462 = por %p460, %p461
      %p464 = scmp.ne.s32.totalorder %s447, %s463
      %p465 = scmp.eq.s32.totalorder %s37, 0
      %p466 = por %p464, %p465
      %p467 = scmp.le.s32.totalorder 1, %s31
      %p468 = scmp.lt.s32.totalorder %s31, 3
      %p469 = pnand %p467, %p468
      %p470 = pneg %p469
      // Predicated region
      $region9: #{tpu_custom_call.1} parent=5 // pred_check
        _
      $region10: #{tpu_custom_call.1} parent=5 // pred_check_branch
        %472 = sbr.rel (%p469) target = $region12
      $region11: #{tpu_custom_call.1} parent=5 // pred_region
        %s473 = ssub.s32 %s31, 1
        // Predicated region
        $region13: #{tpu_custom_call.1} parent=11 // pred_check
          %p474 = pneg %p116
        $region14: #{tpu_custom_call.1} parent=11 // pred_check_branch
          %476 = sbr.rel (%p474) target = $region16
        $region15: #{tpu_custom_call.1} parent=11 // pred_region
          _
        $region16: #{tpu_custom_call.1} parent=11 // pred_fallthru
          _
        // Predicated region
        $region17: #{tpu_custom_call.1} parent=11 // pred_check
          %p477 = pneg %p137
        $region18: #{tpu_custom_call.1} parent=11 // pred_check_branch
          %479 = sbr.rel (%p477) target = $region20
        $region19: #{tpu_custom_call.1} parent=11 // pred_region
          %s481 = ssub.s32 256, 256
          %482 = vsyncadd [#allocation3], %s481
          %s483 = sshll.u32 [#allocation2], 4
          %s484 = int_to_ptr.vmem [resolvable:$true] %s483
          %489 = dma.hbm_to_vmem [thread:$0]  %s3, 256, %s484, [#allocation3], 64, 64, 4
        $region20: #{tpu_custom_call.1} parent=11 // pred_fallthru
          _
        // Predicated region
        $region21: #{tpu_custom_call.1} parent=11 // pred_check
          %p490 = pneg %p158
        $region22: #{tpu_custom_call.1} parent=11 // pred_check_branch
          %492 = sbr.rel (%p490) target = $region24
        $region23: #{tpu_custom_call.1} parent=11 // pred_region
          %s494 = ssub.s32 256, 256
          %495 = vsyncadd [#allocation6], %s494
          %s496 = sshll.u32 [#allocation5], 4
          %s497 = int_to_ptr.vmem [resolvable:$true] %s496
          %502 = dma.hbm_to_vmem [thread:$0]  %s4, 256, %s497, [#allocation6], 64, 64, 4
        $region24: #{tpu_custom_call.1} parent=11 // pred_fallthru
          _
        // Predicated region
        $region25: #{tpu_custom_call.1} parent=11 // pred_check
          %p503 = pneg %p179
        $region26: #{tpu_custom_call.1} parent=11 // pred_check_branch
          %505 = sbr.rel (%p503) target = $region28
        $region27: #{tpu_custom_call.1} parent=11 // pred_region
          %s507 = ssub.s32 16, 16
          %508 = vsyncadd [#allocation6], %s507
          %s510 = sshll.u32 [#allocation7], 4
          %s511 = int_to_ptr.vmem [resolvable:$true] %s510
          %513 = dma.hbm_to_vmem [thread:$0]  %s5, 16, %s511, [#allocation6]
        $region28: #{tpu_custom_call.1} parent=11 // pred_fallthru
          _
        // Predicated region
        $region29: #{tpu_custom_call.1} parent=11 // pred_check
          %p514 = pneg %p200
        $region30: #{tpu_custom_call.1} parent=11 // pred_check_branch
          %516 = sbr.rel (%p514) target = $region32
        $region31: #{tpu_custom_call.1} parent=11 // pred_region
          %s518 = ssub.s32 16, 16
          %519 = vsyncadd [#allocation9], %s518
          %s521 = sshll.u32 [#allocation8], 4
          %s522 = int_to_ptr.vmem [resolvable:$true] %s521
          %524 = dma.hbm_to_vmem [thread:$0]  %s6, 16, %s522, [#allocation9]
        $region32: #{tpu_custom_call.1} parent=11 // pred_fallthru
          _
        // Predicated region
        $region33: #{tpu_custom_call.1} parent=11 // pred_check
          %p525 = pneg %p221
        $region34: #{tpu_custom_call.1} parent=11 // pred_check_branch
          %527 = sbr.rel (%p525) target = $region36
        $region35: #{tpu_custom_call.1} parent=11 // pred_region
          %s529 = ssub.s32 16, 16
          %530 = vsyncadd [#allocation9], %s529
          %s532 = sshll.u32 [#allocation10], 4
          %s533 = int_to_ptr.vmem [resolvable:$true] %s532
          %535 = dma.hbm_to_vmem [thread:$0]  %s7, 16, %s533, [#allocation9]
        $region36: #{tpu_custom_call.1} parent=11 // pred_fallthru
          _
        // Predicated region
        $region37: #{tpu_custom_call.1} parent=11 // pred_check
          %p536 = pneg %p242
        $region38: #{tpu_custom_call.1} parent=11 // pred_check_branch
          %538 = sbr.rel (%p536) target = $region40
        $region39: #{tpu_custom_call.1} parent=11 // pred_region
          %s540 = ssub.s32 256, 256
          %541 = vsyncadd [#allocation12], %s540
          %s542 = sshll.u32 [#allocation11], 4
          %s543 = int_to_ptr.vmem [resolvable:$true] %s542
          %548 = dma.hbm_to_vmem [thread:$0]  %s8, 256, %s543, [#allocation12], 64, 64, 4
        $region40: #{tpu_custom_call.1} parent=11 // pred_fallthru
          _
        // Predicated region
        $region41: #{tpu_custom_call.1} parent=11 // pred_check
          %p549 = pneg %p263
        $region42: #{tpu_custom_call.1} parent=11 // pred_check_branch
          %551 = sbr.rel (%p549) target = $region44
        $region43: #{tpu_custom_call.1} parent=11 // pred_region
          %s553 = ssub.s32 16, 16
          %554 = vsyncadd [#allocation12], %s553
          %s556 = sshll.u32 [#allocation13], 4
          %s557 = int_to_ptr.vmem [resolvable:$true] %s556
          %559 = dma.hbm_to_vmem [thread:$0]  %s9, 16, %s557, [#allocation12]
        $region44: #{tpu_custom_call.1} parent=11 // pred_fallthru
          _
        // Predicated region
        $region45: #{tpu_custom_call.1} parent=11 // pred_check
          %p560 = pneg %p284
        $region46: #{tpu_custom_call.1} parent=11 // pred_check_branch
          %562 = sbr.rel (%p560) target = $region48
        $region47: #{tpu_custom_call.1} parent=11 // pred_region
          _
        $region48: #{tpu_custom_call.1} parent=11 // pred_fallthru
          _
        // Predicated region
        $region49: #{tpu_custom_call.1} parent=11 // pred_check
          %p563 = pneg %p305
        $region50: #{tpu_custom_call.1} parent=11 // pred_check_branch
          %565 = sbr.rel (%p563) target = $region52
        $region51: #{tpu_custom_call.1} parent=11 // pred_region
          _
        $region52: #{tpu_custom_call.1} parent=11 // pred_fallthru
          _
        // Predicated region
        $region53: #{tpu_custom_call.1} parent=11 // pred_check
          %p566 = pneg %p326
        $region54: #{tpu_custom_call.1} parent=11 // pred_check_branch
          %568 = sbr.rel (%p566) target = $region56
        $region55: #{tpu_custom_call.1} parent=11 // pred_region
          _
        $region56: #{tpu_custom_call.1} parent=11 // pred_fallthru
          _
        // Predicated region
        $region57: #{tpu_custom_call.1} parent=11 // pred_check
          %p569 = pneg %p347
        $region58: #{tpu_custom_call.1} parent=11 // pred_check_branch
          %571 = sbr.rel (%p569) target = $region60
        $region59: #{tpu_custom_call.1} parent=11 // pred_region
          _
        $region60: #{tpu_custom_call.1} parent=11 // pred_fallthru
          _
        // Predicated region
        $region61: #{tpu_custom_call.1} parent=11 // pred_check
          %p572 = pneg %p368
        $region62: #{tpu_custom_call.1} parent=11 // pred_check_branch
          %574 = sbr.rel (%p572) target = $region64
        $region63: #{tpu_custom_call.1} parent=11 // pred_region
          _
        $region64: #{tpu_custom_call.1} parent=11 // pred_fallthru
          _
        // Predicated region
        $region65: #{tpu_custom_call.1} parent=11 // pred_check
          %p575 = pneg %p389
        $region66: #{tpu_custom_call.1} parent=11 // pred_check_branch
          %577 = sbr.rel (%p575) target = $region68
        $region67: #{tpu_custom_call.1} parent=11 // pred_region
          _
        $region68: #{tpu_custom_call.1} parent=11 // pred_fallthru
          _
        // Predicated region
        $region69: #{tpu_custom_call.1} parent=11 // pred_check
          %p578 = pneg %p410
        $region70: #{tpu_custom_call.1} parent=11 // pred_check_branch
          %580 = sbr.rel (%p578) target = $region72
        $region71: #{tpu_custom_call.1} parent=11 // pred_region
          _
        $region72: #{tpu_custom_call.1} parent=11 // pred_fallthru
          _
        // Predicated region
        $region73: #{tpu_custom_call.1} parent=11 // pred_check
          %p581 = pneg %p431
        $region74: #{tpu_custom_call.1} parent=11 // pred_check_branch
          %583 = sbr.rel (%p581) target = $region76
        $region75: #{tpu_custom_call.1} parent=11 // pred_region
          _
        $region76: #{tpu_custom_call.1} parent=11 // pred_fallthru
          _
      $region12: #{tpu_custom_call.1} parent=5 // pred_fallthru
        _
      %p584 = scmp.lt.s32.totalorder %s31, 2
      // Predicated region
      $region77: #{tpu_custom_call.1} parent=5 // pred_check
        %p585 = pneg %p584
      $region78: #{tpu_custom_call.1} parent=5 // pred_check_branch
        %587 = sbr.rel (%p585) target = $region80
      $region79: #{tpu_custom_call.1} parent=5 // pred_region
        // Predicated region
        $region81: #{tpu_custom_call.1} parent=79 // pred_check
          %p588 = pneg %p63
        $region82: #{tpu_custom_call.1} parent=79 // pred_check_branch
          %590 = sbr.rel (%p588) target = $region84
        $region83: #{tpu_custom_call.1} parent=79 // pred_region
          %p591 = scmp.lt.s32.totalorder %s38, 1
          %s592 = scalar_select %p591, %s38, 1
          %s593 = smul.addr %s592, 8
          %s594 = scalar_lea.vmem %s0, %s593
        $region84: #{tpu_custom_call.1} parent=79 // pred_fallthru
          _
        // Predicated region
        $region85: #{tpu_custom_call.1} parent=79 // pred_check
          %p595 = pneg %p89
        $region86: #{tpu_custom_call.1} parent=79 // pred_check_branch
          %597 = sbr.rel (%p595) target = $region88
        $region87: #{tpu_custom_call.1} parent=79 // pred_region
          %p598 = scmp.lt.s32.totalorder %s38, 1
          %s599 = scalar_select %p598, %s38, 1
          %s600 = smul.addr %s599, 8
          %s601 = scalar_lea.vmem %s1, %s600
        $region88: #{tpu_custom_call.1} parent=79 // pred_fallthru
          _
      $region80: #{tpu_custom_call.1} parent=5 // pred_fallthru
        _
      %p602 = scmp.le.s32.totalorder 1, %s31
      %p603 = scmp.lt.s32.totalorder %s31, 3
      %p604 = pnand %p602, %p603
      %p605 = pneg %p604
      // Predicated region
      $region89: #{tpu_custom_call.1} parent=5 // pred_check
        _
      $region90: #{tpu_custom_call.1} parent=5 // pred_check_branch
        %607 = sbr.rel (%p604) target = $region92
      $region91: #{tpu_custom_call.1} parent=5 // pred_region
        %s608 = ssub.s32 %s31, 1
        // Predicated region
        $region93: #{tpu_custom_call.1} parent=91 // pred_check
          %p609 = pneg %p137
        $region94: #{tpu_custom_call.1} parent=91 // pred_check_branch
          %611 = sbr.rel (%p609) target = $region96
        $region95: #{tpu_custom_call.1} parent=91 // pred_region
          %612 = dma.done [#allocation3], 256
        $region96: #{tpu_custom_call.1} parent=91 // pred_fallthru
          _
        // Predicated region
        $region97: #{tpu_custom_call.1} parent=91 // pred_check
          %p613 = pneg %p158
        $region98: #{tpu_custom_call.1} parent=91 // pred_check_branch
          %615 = sbr.rel (%p613) target = $region100
        $region99: #{tpu_custom_call.1} parent=91 // pred_region
          %616 = dma.done [#allocation6], 256
        $region100: #{tpu_custom_call.1} parent=91 // pred_fallthru
          _
        // Predicated region
        $region101: #{tpu_custom_call.1} parent=91 // pred_check
          %p617 = pneg %p179
        $region102: #{tpu_custom_call.1} parent=91 // pred_check_branch
          %619 = sbr.rel (%p617) target = $region104
        $region103: #{tpu_custom_call.1} parent=91 // pred_region
          %620 = dma.done [#allocation6], 16
        $region104: #{tpu_custom_call.1} parent=91 // pred_fallthru
          _
        // Predicated region
        $region105: #{tpu_custom_call.1} parent=91 // pred_check
          %p621 = pneg %p200
        $region106: #{tpu_custom_call.1} parent=91 // pred_check_branch
          %623 = sbr.rel (%p621) target = $region108
        $region107: #{tpu_custom_call.1} parent=91 // pred_region
          %624 = dma.done [#allocation9], 16
        $region108: #{tpu_custom_call.1} parent=91 // pred_fallthru
          _
        // Predicated region
        $region109: #{tpu_custom_call.1} parent=91 // pred_check
          %p625 = pneg %p221
        $region110: #{tpu_custom_call.1} parent=91 // pred_check_branch
          %627 = sbr.rel (%p625) target = $region112
        $region111: #{tpu_custom_call.1} parent=91 // pred_region
          %628 = dma.done [#allocation9], 16
        $region112: #{tpu_custom_call.1} parent=91 // pred_fallthru
          _
        // Predicated region
        $region113: #{tpu_custom_call.1} parent=91 // pred_check
          %p629 = pneg %p242
        $region114: #{tpu_custom_call.1} parent=91 // pred_check_branch
          %631 = sbr.rel (%p629) target = $region116
        $region115: #{tpu_custom_call.1} parent=91 // pred_region
          %632 = dma.done [#allocation12], 256
        $region116: #{tpu_custom_call.1} parent=91 // pred_fallthru
          _
        // Predicated region
        $region117: #{tpu_custom_call.1} parent=91 // pred_check
          %p633 = pneg %p263
        $region118: #{tpu_custom_call.1} parent=91 // pred_check_branch
          %635 = sbr.rel (%p633) target = $region120
        $region119: #{tpu_custom_call.1} parent=91 // pred_region
          %636 = dma.done [#allocation12], 16
        $region120: #{tpu_custom_call.1} parent=91 // pred_fallthru
          _
        %p637 = scmp.lt.s32.totalorder %s40, 1
        %s638 = scalar_select %p637, %s40, 1
        %s639 = smul.addr %s638, 8
        %s640 = scalar_lea.vmem %s0, %s639
        %p641 = pneg %p69
        %p642 = pneg %p66
        %p643 = scmp.lt.s32.totalorder %s40, 1
        %s644 = scalar_select %p643, %s40, 1
        %s645 = smul.addr %s644, 8
        %s646 = scalar_lea.vmem %s1, %s645
        %p647 = pneg %p95
        %p648 = pneg %p92
        %p649 = pneg %p116
        %p650 = pneg %p113
        %p651 = pneg %p137
        %p652 = pneg %p134
        %p653 = pneg %p158
        %p654 = pneg %p155
        %p655 = pneg %p179
        %p656 = pneg %p176
        %p657 = pneg %p200
        %p658 = pneg %p197
        %p659 = pneg %p221
        %p660 = pneg %p218
        %p661 = pneg %p242
        %p662 = pneg %p239
        %p663 = pneg %p263
        %p664 = pneg %p260
        %p665 = pneg %p284
        %p666 = pneg %p281
        %p667 = pneg %p305
        %p668 = pneg %p302
        %p669 = pneg %p326
        %p670 = pneg %p323
        %p671 = pneg %p347
        %p672 = pneg %p344
        %p673 = pneg %p368
        %p674 = pneg %p365
        %p675 = pneg %p389
        %p676 = pneg %p386
        %p677 = pneg %p410
        %p678 = pneg %p407
        %p679 = pneg %p431
        %p680 = pneg %p428
        %p681 = pneg %p459
        %p682 = pneg %p456
        %s683 = sand.u32 %s446, 1
        %s684 = scalar_lea.sflag [#allocation4], %s683
        %s685 = sand.u32 %s446, 1
        %s686 = smul.addr %s685, 8
        %s687 = scalar_lea.vmem [#allocation14], %s686
        %p688 = scmp.lt.s32.totalorder %s40, 1
        %s689 = scalar_select %p688, %s40, 1
        %s690 = smul.addr %s689, 8
        %s691 = scalar_lea.vmem %s0, %s690
        %p692 = scmp.lt.s32.totalorder %s40, 1
        %s693 = scalar_select %p692, %s40, 1
        %s694 = smul.addr %s693, 8
        %s695 = scalar_lea.vmem %s1, %s694
        %v697 = vld [vmem:[%s2] sm:$0xf]
        %v698 = vld [vmem:[%s2 + $0x4] sm:$0xf]
        %v699 = vld [vmem:[%s2 + $0x8] sm:$0xf]
        %v700 = vld [vmem:[%s2 + $0xc] sm:$0xf]
        %v701 = vld [vmem:[#allocation2] sm:$0xf]
        %v702 = vld [vmem:[#allocation2 + $0x4] sm:$0xf]
        %v703 = vld [vmem:[#allocation2 + $0x8] sm:$0xf]
        %v704 = vld [vmem:[#allocation2 + $0xc] sm:$0xf]
        %v705 = vld [vmem:[#allocation5] sm:$0xf]
        %v706 = vld [vmem:[#allocation5 + $0x4] sm:$0xf]
        %v707 = vld [vmem:[#allocation5 + $0x8] sm:$0xf]
        %v708 = vld [vmem:[#allocation5 + $0xc] sm:$0xf]
        %v709 = vld [vmem:[#allocation11] sm:$0xf]
        %v710 = vld [vmem:[#allocation11 + $0x4] sm:$0xf]
        %v711 = vld [vmem:[#allocation11 + $0x8] sm:$0xf]
        %v712 = vld [vmem:[#allocation11 + $0xc] sm:$0xf]
        %v713 = vld [vmem:[%s10] sm:$0xf]
        %v714 = vld [vmem:[%s10 + $0x4] sm:$0xf]
        %v715 = vld [vmem:[%s10 + $0x8] sm:$0xf]
        %v716 = vld [vmem:[%s10 + $0xc] sm:$0xf]
        %v717 = vld [vmem:[%s12] sm:$0xf]
        %v718 = vld [vmem:[%s12 + $0x4] sm:$0xf]
        %v719 = vld [vmem:[%s12 + $0x8] sm:$0xf]
        %v720 = vld [vmem:[%s12 + $0xc] sm:$0xf]
        %v721 = vld [vmem:[%s12 + $0x10] sm:$0xf]
        %v722 = vld [vmem:[%s12 + $0x14] sm:$0xf]
        %v723 = vld [vmem:[%s12 + $0x18] sm:$0xf]
        %v724 = vld [vmem:[%s12 + $0x1c] sm:$0xf]
        %v725 = vld [vmem:[#allocation7] sm:$0x1]
        %v726 = vld [vmem:[#allocation8] sm:$0x1]
        %v727 = vld [vmem:[#allocation10] sm:$0x1]
        %v728 = vld [vmem:[#allocation13] sm:$0x1]
        %v729 = vld [vmem:[%s11] sm:$0x1]
        %v730 = vld [vmem:[%s13] sm:$0x1]
        %v731 = vld [vmem:[%s14] sm:$0x1]
        %v732 = vld [vmem:[%s15] sm:$0x1]
        %v733 = vld [vmem:[%s16] sm:$0x1]
        %v734 = vld [vmem:[%s17] sm:$0x1]
        %v735 = vld [vmem:[%s691] sm:$0xff]
        %v736 = vld [vmem:[%s695] sm:$0xff]
        %v737 = vadd.f32 %v735, %v736
        %v738 = vpack.c.bf16 %v737, %v737
        %v739 = vpack.c.bf16 %v735, %v735
        %v741 = vlaneseq
        %v742 = vshrl.u32 %v741, 7
        %v743 = vsub.s32 0, %v742
        %v744 = vrot.slane %v725, %v743
        %v750 = vunpack.c.l.b16 %v697
        %v751 = vunpack.c.l.b16 %v698
        %v752 = vunpack.c.l.b16 %v699
        %v753 = vunpack.c.l.b16 %v700
        %v754 = vpack.c.b16 %v751, %v750
        %v755 = vpack.c.b16 %v753, %v752
        %vm758 = vcmask 261120
        %v760 = vsel %vm758, %v738, 0
        %762 = vmatprep.subr.bf16.mxu0 0
        %763 = vmatpush1.bf16.msra.mxu0 0
        %764 = vmatprep.subr.bf16.mxu0 0
        %765 = vmatpush1.bf16.msra.mxu0 0
        %766 = vmatprep.subr.bf16.mxu0 0
        %767 = vmatpush1.bf16.msra.mxu0 0
        %768 = vmatprep.subr.bf16.mxu0 0
        %769 = vmatpush1.bf16.msra.mxu0 0
        %770 = vmatprep.subr.bf16.mxu0 0
        %771 = vmatpush1.bf16.msra.mxu0 0
        %772 = vmatprep.subr.bf16.mxu0 0
        %773 = vmatpush1.bf16.msra.mxu0 0
        %774 = vmatprep.subr.bf16.mxu0 0
        %775 = vmatpush1.bf16.msra.mxu0 %v755
        %776 = vmatprep.subr.bf16.mxu0 0
        %777 = vmatpush1.bf16.msra.mxu0 %v754
        %778 = vmatprep.subr.bf16.mxu0 0
        %779 = vmatpush2.bf16.msra.mxu0 0
        %780 = vmatprep.subr.bf16.mxu0 0
        %781 = vmatpush2.bf16.msra.mxu0 0
        %782 = vmatprep.subr.bf16.mxu0 0
        %783 = vmatpush2.bf16.msra.mxu0 0
        %784 = vmatprep.subr.bf16.mxu0 0
        %785 = vmatpush2.bf16.msra.mxu0 0
        %786 = vmatprep.subr.bf16.mxu0 0
        %787 = vmatpush2.bf16.msra.mxu0 0
        %788 = vmatprep.subr.bf16.mxu0 0
        %789 = vmatpush2.bf16.msra.mxu0 0
        %790 = vmatprep.subr.bf16.mxu0 0
        %791 = vmatpush2.bf16.msra.mxu0 0
        %792 = vmatprep.subr.bf16.mxu0 0
        %793 = vmatpush2.bf16.msra.mxu0 0
        %794 = vmatprep.mubr.bf16.mxu0 0
        %795 = vmatmul.mubr.bf16.gmra.mxu0 %v760
        %v796 = vpop.f32.mrf.mxu0
        %v797 = vadd.f32 %v744, %v796
        %v798 = vpop.f32.mrf.mxu0
        %v799 = vpop.f32.mrf.mxu0
        %v800 = vpop.f32.mrf.mxu0
        %801 = vdwg.mxu0
        %v803 = vlaneseq
        %v804 = vshrl.u32 %v803, 7
        %v805 = vsub.s32 0, %v804
        %v806 = vrot.slane %v726, %v805
        %v812 = vunpack.c.l.b16 %v701
        %v813 = vunpack.c.l.b16 %v702
        %v814 = vunpack.c.l.b16 %v703
        %v815 = vunpack.c.l.b16 %v704
        %v816 = vpack.c.b16 %v813, %v812
        %v817 = vpack.c.b16 %v815, %v814
        %820 = vmatprep.subr.bf16.mxu0 0
        %821 = vmatpush1.bf16.msra.mxu0 0
        %822 = vmatprep.subr.bf16.mxu0 0
        %823 = vmatpush1.bf16.msra.mxu0 0
        %824 = vmatprep.subr.bf16.mxu0 0
        %825 = vmatpush1.bf16.msra.mxu0 0
        %826 = vmatprep.subr.bf16.mxu0 0
        %827 = vmatpush1.bf16.msra.mxu0 0
        %828 = vmatprep.subr.bf16.mxu0 0
        %829 = vmatpush1.bf16.msra.mxu0 0
        %830 = vmatprep.subr.bf16.mxu0 0
        %831 = vmatpush1.bf16.msra.mxu0 0
        %832 = vmatprep.subr.bf16.mxu0 0
        %833 = vmatpush1.bf16.msra.mxu0 %v817
        %834 = vmatprep.subr.bf16.mxu0 0
        %835 = vmatpush1.bf16.msra.mxu0 %v816
        %836 = vmatprep.subr.bf16.mxu0 0
        %837 = vmatpush2.bf16.msra.mxu0 0
        %838 = vmatprep.subr.bf16.mxu0 0
        %839 = vmatpush2.bf16.msra.mxu0 0
        %840 = vmatprep.subr.bf16.mxu0 0
        %841 = vmatpush2.bf16.msra.mxu0 0
        %842 = vmatprep.subr.bf16.mxu0 0
        %843 = vmatpush2.bf16.msra.mxu0 0
        %844 = vmatprep.subr.bf16.mxu0 0
        %845 = vmatpush2.bf16.msra.mxu0 0
        %846 = vmatprep.subr.bf16.mxu0 0
        %847 = vmatpush2.bf16.msra.mxu0 0
        %848 = vmatprep.subr.bf16.mxu0 0
        %849 = vmatpush2.bf16.msra.mxu0 0
        %850 = vmatprep.subr.bf16.mxu0 0
        %851 = vmatpush2.bf16.msra.mxu0 0
        %852 = vmatprep.mubr.bf16.mxu0 0
        %853 = vmatmul.mubr.bf16.gmra.mxu0 %v760
        %v854 = vpop.f32.mrf.mxu0
        %v855 = vadd.f32 %v806, %v854
        %v856 = vpop.f32.mrf.mxu0
        %v857 = vpop.f32.mrf.mxu0
        %v858 = vpop.f32.mrf.mxu0
        %859 = vdwg.mxu0
        %v861 = vlaneseq
        %v862 = vshrl.u32 %v861, 7
        %v863 = vsub.s32 0, %v862
        %v864 = vrot.slane %v727, %v863
        %v870 = vunpack.c.l.b16 %v705
        %v871 = vunpack.c.l.b16 %v706
        %v872 = vunpack.c.l.b16 %v707
        %v873 = vunpack.c.l.b16 %v708
        %v874 = vpack.c.b16 %v871, %v870
        %v875 = vpack.c.b16 %v873, %v872
        %v879 = vsel %vm758, %v739, 0
        %881 = vmatprep.subr.bf16.mxu0 0
        %882 = vmatpush1.bf16.msra.mxu0 0
        %883 = vmatprep.subr.bf16.mxu0 0
        %884 = vmatpush1.bf16.msra.mxu0 0
        %885 = vmatprep.subr.bf16.mxu0 0
        %886 = vmatpush1.bf16.msra.mxu0 0
        %887 = vmatprep.subr.bf16.mxu0 0
        %888 = vmatpush1.bf16.msra.mxu0 0
        %889 = vmatprep.subr.bf16.mxu0 0
        %890 = vmatpush1.bf16.msra.mxu0 0
        %891 = vmatprep.subr.bf16.mxu0 0
        %892 = vmatpush1.bf16.msra.mxu0 0
        %893 = vmatprep.subr.bf16.mxu0 0
        %894 = vmatpush1.bf16.msra.mxu0 %v875
        %895 = vmatprep.subr.bf16.mxu0 0
        %896 = vmatpush1.bf16.msra.mxu0 %v874
        %897 = vmatprep.subr.bf16.mxu0 0
        %898 = vmatpush2.bf16.msra.mxu0 0
        %899 = vmatprep.subr.bf16.mxu0 0
        %900 = vmatpush2.bf16.msra.mxu0 0
        %901 = vmatprep.subr.bf16.mxu0 0
        %902 = vmatpush2.bf16.msra.mxu0 0
        %903 = vmatprep.subr.bf16.mxu0 0
        %904 = vmatpush2.bf16.msra.mxu0 0
        %905 = vmatprep.subr.bf16.mxu0 0
        %906 = vmatpush2.bf16.msra.mxu0 0
        %907 = vmatprep.subr.bf16.mxu0 0
        %908 = vmatpush2.bf16.msra.mxu0 0
        %909 = vmatprep.subr.bf16.mxu0 0
        %910 = vmatpush2.bf16.msra.mxu0 0
        %911 = vmatprep.subr.bf16.mxu0 0
        %912 = vmatpush2.bf16.msra.mxu0 0
        %913 = vmatprep.mubr.bf16.mxu0 0
        %914 = vmatmul.mubr.bf16.gmra.mxu0 %v879
        %v915 = vpop.f32.mrf.mxu0
        %v916 = vadd.f32 %v864, %v915
        %v917 = vpop.f32.mrf.mxu0
        %v918 = vpop.f32.mrf.mxu0
        %v919 = vpop.f32.mrf.mxu0
        %920 = vdwg.mxu0
        %v921 = vpack.c.bf16 %v797, %v797
        %v922 = vpack.c.bf16 %v855, %v855
        %v923 = vpack.c.bf16 %v916, %v916
        %vm924 = vcmask 64512
        %v926 = vsel %vm924, %v921, 0
        %v929 = vsel %vm924, %v922, 0
        %931 = vmatprep.subr.bf16.mxu0 0
        %932 = vmatpush1.bf16.xpose.msra.mxu0 0
        %933 = vmatprep.subr.bf16.mxu0 0
        %934 = vmatpush1.bf16.xpose.msra.mxu0 0
        %935 = vmatprep.subr.bf16.mxu0 0
        %936 = vmatpush1.bf16.xpose.msra.mxu0 0
        %937 = vmatprep.subr.bf16.mxu0 0
        %938 = vmatpush1.bf16.xpose.msra.mxu0 0
        %939 = vmatprep.subr.bf16.mxu0 0
        %940 = vmatpush1.bf16.xpose.msra.mxu0 0
        %941 = vmatprep.subr.bf16.mxu0 0
        %942 = vmatpush1.bf16.xpose.msra.mxu0 0
        %943 = vmatprep.subr.bf16.mxu0 0
        %944 = vmatpush1.bf16.xpose.msra.mxu0 0
        %945 = vmatprep.subr.bf16.mxu0 0
        %946 = vmatpush1.bf16.xpose.msra.mxu0 %v929
        %947 = vmatprep.subr.bf16.mxu0 0
        %948 = vmatpush2.bf16.xpose.msra.mxu0 0
        %949 = vmatprep.subr.bf16.mxu0 0
        %950 = vmatpush2.bf16.xpose.msra.mxu0 0
        %951 = vmatprep.subr.bf16.mxu0 0
        %952 = vmatpush2.bf16.xpose.msra.mxu0 0
        %953 = vmatprep.subr.bf16.mxu0 0
        %954 = vmatpush2.bf16.xpose.msra.mxu0 0
        %955 = vmatprep.subr.bf16.mxu0 0
        %956 = vmatpush2.bf16.xpose.msra.mxu0 0
        %957 = vmatprep.subr.bf16.mxu0 0
        %958 = vmatpush2.bf16.xpose.msra.mxu0 0
        %959 = vmatprep.subr.bf16.mxu0 0
        %960 = vmatpush2.bf16.xpose.msra.mxu0 0
        %961 = vmatprep.subr.bf16.mxu0 0
        %962 = vmatpush2.bf16.xpose.msra.mxu0 0
        %963 = vmatprep.mubr.bf16.mxu0 0
        %964 = vmatmul.mubr.bf16.gmra.mxu0 %v926
        %v965 = vpop.f32.mrf.mxu0
        %v966 = vadd.f32 0.0, %v965
        %v967 = vpop.f32.mrf.mxu0
        %v968 = vpop.f32.mrf.mxu0
        %v969 = vpop.f32.mrf.mxu0
        %970 = vdwg.mxu0
        %v971 = vmul.f32 %v966, 0.35355338
        %v972 = vsel %vm924, %v971, -inf
        %973 = vmax.xlane.f32.xlu0 %v972
        %v974 = vpop.xlane.xlu0 %973
        %v975 = vsub.f32 %v971, %v974
        %v976 = vmul.f32 %v975, 1.442695
        %v977 = vpow.pop %v976
        %v978 = vsel %vm924, %v977, 0.0
        %979 = vadd.xlane.f32.xlu0 %v978
        %v980 = vpop.xlane.xlu0 %979
        %v981 = vrcp.pop %v980
        %v982 = vmul.f32 %v977, %v981
        %v983 = vpack.c.bf16 %v982, %v982
        %v985 = vsel %vm924, %v983, 0
        %vm987 = vcmask 1043456
        %v989 = vsel %vm987, %v923, 0
        %991 = vmatprep.subr.bf16.mxu0 0
        %992 = vmatpush1.bf16.msra.mxu0 0
        %993 = vmatprep.subr.bf16.mxu0 0
        %994 = vmatpush1.bf16.msra.mxu0 0
        %995 = vmatprep.subr.bf16.mxu0 0
        %996 = vmatpush1.bf16.msra.mxu0 0
        %997 = vmatprep.subr.bf16.mxu0 0
        %998 = vmatpush1.bf16.msra.mxu0 0
        %999 = vmatprep.subr.bf16.mxu0 0
        %1000 = vmatpush1.bf16.msra.mxu0 0
        %1001 = vmatprep.subr.bf16.mxu0 0
        %1002 = vmatpush1.bf16.msra.mxu0 0
        %1003 = vmatprep.subr.bf16.mxu0 0
        %1004 = vmatpush1.bf16.msra.mxu0 0
        %1005 = vmatprep.subr.bf16.mxu0 0
        %1006 = vmatpush1.bf16.msra.mxu0 %v989
        %1007 = vmatprep.subr.bf16.mxu0 0
        %1008 = vmatpush2.bf16.msra.mxu0 0
        %1009 = vmatprep.subr.bf16.mxu0 0
        %1010 = vmatpush2.bf16.msra.mxu0 0
        %1011 = vmatprep.subr.bf16.mxu0 0
        %1012 = vmatpush2.bf16.msra.mxu0 0
        %1013 = vmatprep.subr.bf16.mxu0 0
        %1014 = vmatpush2.bf16.msra.mxu0 0
        %1015 = vmatprep.subr.bf16.mxu0 0
        %1016 = vmatpush2.bf16.msra.mxu0 0
        %1017 = vmatprep.subr.bf16.mxu0 0
        %1018 = vmatpush2.bf16.msra.mxu0 0
        %1019 = vmatprep.subr.bf16.mxu0 0
        %1020 = vmatpush2.bf16.msra.mxu0 0
        %1021 = vmatprep.subr.bf16.mxu0 0
        %1022 = vmatpush2.bf16.msra.mxu0 0
        %1023 = vmatprep.mubr.bf16.mxu0 0
        %1024 = vmatmul.mubr.bf16.gmra.mxu0 %v985
        %v1025 = vpop.f32.mrf.mxu0
        %v1026 = vadd.f32 0.0, %v1025
        %v1027 = vpop.f32.mrf.mxu0
        %v1028 = vpop.f32.mrf.mxu0
        %v1029 = vpop.f32.mrf.mxu0
        %1030 = vdwg.mxu0
        %v1031 = vpack.c.bf16 %v1026, %v1026
        %1033 = vrot.lane.b32.xlu0 %v921, 120
        %v1034 = vpop.permute.xlu0 %1033
        %1036 = vrot.lane.b32.xlu0 %v922, 120
        %v1037 = vpop.permute.xlu0 %1036
        %v1039 = vsel %vm924, %v1034, 0
        %v1042 = vsel %vm924, %v1037, 0
        %1044 = vmatprep.subr.bf16.mxu0 0
        %1045 = vmatpush1.bf16.xpose.msra.mxu0 0
        %1046 = vmatprep.subr.bf16.mxu0 0
        %1047 = vmatpush1.bf16.xpose.msra.mxu0 0
        %1048 = vmatprep.subr.bf16.mxu0 0
        %1049 = vmatpush1.bf16.xpose.msra.mxu0 0
        %1050 = vmatprep.subr.bf16.mxu0 0
        %1051 = vmatpush1.bf16.xpose.msra.mxu0 0
        %1052 = vmatprep.subr.bf16.mxu0 0
        %1053 = vmatpush1.bf16.xpose.msra.mxu0 0
        %1054 = vmatprep.subr.bf16.mxu0 0
        %1055 = vmatpush1.bf16.xpose.msra.mxu0 0
        %1056 = vmatprep.subr.bf16.mxu0 0
        %1057 = vmatpush1.bf16.xpose.msra.mxu0 0
        %1058 = vmatprep.subr.bf16.mxu0 0
        %1059 = vmatpush1.bf16.xpose.msra.mxu0 %v1042
        %1060 = vmatprep.subr.bf16.mxu0 0
        %1061 = vmatpush2.bf16.xpose.msra.mxu0 0
        %1062 = vmatprep.subr.bf16.mxu0 0
        %1063 = vmatpush2.bf16.xpose.msra.mxu0 0
        %1064 = vmatprep.subr.bf16.mxu0 0
        %1065 = vmatpush2.bf16.xpose.msra.mxu0 0
        %1066 = vmatprep.subr.bf16.mxu0 0
        %1067 = vmatpush2.bf16.xpose.msra.mxu0 0
        %1068 = vmatprep.subr.bf16.mxu0 0
        %1069 = vmatpush2.bf16.xpose.msra.mxu0 0
        %1070 = vmatprep.subr.bf16.mxu0 0
        %1071 = vmatpush2.bf16.xpose.msra.mxu0 0
        %1072 = vmatprep.subr.bf16.mxu0 0
        %1073 = vmatpush2.bf16.xpose.msra.mxu0 0
        %1074 = vmatprep.subr.bf16.mxu0 0
        %1075 = vmatpush2.bf16.xpose.msra.mxu0 0
        %1076 = vmatprep.mubr.bf16.mxu0 0
        %1077 = vmatmul.mubr.bf16.gmra.mxu0 %v1039
        %v1078 = vpop.f32.mrf.mxu0
        %v1079 = vadd.f32 0.0, %v1078
        %v1080 = vpop.f32.mrf.mxu0
        %v1081 = vpop.f32.mrf.mxu0
        %v1082 = vpop.f32.mrf.mxu0
        %1083 = vdwg.mxu0
        %v1084 = vmul.f32 %v1079, 0.35355338
        %v1085 = vsel %vm924, %v1084, -inf
        %1086 = vmax.xlane.f32.xlu0 %v1085
        %v1087 = vpop.xlane.xlu0 %1086
        %v1088 = vsub.f32 %v1084, %v1087
        %v1089 = vmul.f32 %v1088, 1.442695
        %v1090 = vpow.pop %v1089
        %v1091 = vsel %vm924, %v1090, 0.0
        %1092 = vadd.xlane.f32.xlu0 %v1091
        %v1093 = vpop.xlane.xlu0 %1092
        %v1094 = vrcp.pop %v1093
        %v1095 = vmul.f32 %v1090, %v1094
        %v1096 = vpack.c.bf16 %v1095, %v1095
        %1098 = vrot.lane.b32.xlu0 %v923, 120
        %v1099 = vpop.permute.xlu0 %1098
        %v1101 = vsel %vm924, %v1096, 0
        %v1104 = vsel %vm987, %v1099, 0
        %1106 = vmatprep.subr.bf16.mxu0 0
        %1107 = vmatpush1.bf16.msra.mxu0 0
        %1108 = vmatprep.subr.bf16.mxu0 0
        %1109 = vmatpush1.bf16.msra.mxu0 0
        %1110 = vmatprep.subr.bf16.mxu0 0
        %1111 = vmatpush1.bf16.msra.mxu0 0
        %1112 = vmatprep.subr.bf16.mxu0 0
        %1113 = vmatpush1.bf16.msra.mxu0 0
        %1114 = vmatprep.subr.bf16.mxu0 0
        %1115 = vmatpush1.bf16.msra.mxu0 0
        %1116 = vmatprep.subr.bf16.mxu0 0
        %1117 = vmatpush1.bf16.msra.mxu0 0
        %1118 = vmatprep.subr.bf16.mxu0 0
        %1119 = vmatpush1.bf16.msra.mxu0 0
        %1120 = vmatprep.subr.bf16.mxu0 0
        %1121 = vmatpush1.bf16.msra.mxu0 %v1104
        %1122 = vmatprep.subr.bf16.mxu0 0
        %1123 = vmatpush2.bf16.msra.mxu0 0
        %1124 = vmatprep.subr.bf16.mxu0 0
        %1125 = vmatpush2.bf16.msra.mxu0 0
        %1126 = vmatprep.subr.bf16.mxu0 0
        %1127 = vmatpush2.bf16.msra.mxu0 0
        %1128 = vmatprep.subr.bf16.mxu0 0
        %1129 = vmatpush2.bf16.msra.mxu0 0
        %1130 = vmatprep.subr.bf16.mxu0 0
        %1131 = vmatpush2.bf16.msra.mxu0 0
        %1132 = vmatprep.subr.bf16.mxu0 0
        %1133 = vmatpush2.bf16.msra.mxu0 0
        %1134 = vmatprep.subr.bf16.mxu0 0
        %1135 = vmatpush2.bf16.msra.mxu0 0
        %1136 = vmatprep.subr.bf16.mxu0 0
        %1137 = vmatpush2.bf16.msra.mxu0 0
        %1138 = vmatprep.mubr.bf16.mxu0 0
        %1139 = vmatmul.mubr.bf16.gmra.mxu0 %v1101
        %v1140 = vpop.f32.mrf.mxu0
        %v1141 = vadd.f32 0.0, %v1140
        %v1142 = vpop.f32.mrf.mxu0
        %v1143 = vpop.f32.mrf.mxu0
        %v1144 = vpop.f32.mrf.mxu0
        %1145 = vdwg.mxu0
        %v1146 = vpack.c.bf16 %v1141, %v1141
        %v1148 = vsel %vm924, %v1146, 0
        %v1151 = vsel %vm987, %v710, 0
        %1153 = vmatprep.subr.bf16.mxu0 0
        %1154 = vmatpush1.bf16.msra.mxu0 0
        %1155 = vmatprep.subr.bf16.mxu0 0
        %1156 = vmatpush1.bf16.msra.mxu0 0
        %1157 = vmatprep.subr.bf16.mxu0 0
        %1158 = vmatpush1.bf16.msra.mxu0 0
        %1159 = vmatprep.subr.bf16.mxu0 0
        %1160 = vmatpush1.bf16.msra.mxu0 0
        %1161 = vmatprep.subr.bf16.mxu0 0
        %1162 = vmatpush1.bf16.msra.mxu0 0
        %1163 = vmatprep.subr.bf16.mxu0 0
        %1164 = vmatpush1.bf16.msra.mxu0 0
        %1165 = vmatprep.subr.bf16.mxu0 0
        %1166 = vmatpush1.bf16.msra.mxu0 0
        %1167 = vmatprep.subr.bf16.mxu0 0
        %1168 = vmatpush1.bf16.msra.mxu0 %v1151
        %1169 = vmatprep.subr.bf16.mxu0 0
        %1170 = vmatpush2.bf16.msra.mxu0 0
        %1171 = vmatprep.subr.bf16.mxu0 0
        %1172 = vmatpush2.bf16.msra.mxu0 0
        %1173 = vmatprep.subr.bf16.mxu0 0
        %1174 = vmatpush2.bf16.msra.mxu0 0
        %1175 = vmatprep.subr.bf16.mxu0 0
        %1176 = vmatpush2.bf16.msra.mxu0 0
        %1177 = vmatprep.subr.bf16.mxu0 0
        %1178 = vmatpush2.bf16.msra.mxu0 0
        %1179 = vmatprep.subr.bf16.mxu0 0
        %1180 = vmatpush2.bf16.msra.mxu0 0
        %1181 = vmatprep.subr.bf16.mxu0 0
        %1182 = vmatpush2.bf16.msra.mxu0 0
        %1183 = vmatprep.subr.bf16.mxu0 0
        %1184 = vmatpush2.bf16.msra.mxu0 0
        %1185 = vmatprep.mubr.bf16.mxu0 0
        %1186 = vmatmul.mubr.bf16.gmra.mxu0 %v1148
        %v1187 = vpop.f32.mrf.mxu0
        %v1188 = vadd.f32 0.0, %v1187
        %v1189 = vpop.f32.mrf.mxu0
        %v1190 = vpop.f32.mrf.mxu0
        %v1191 = vpop.f32.mrf.mxu0
        %1192 = vdwg.mxu0
        %v1194 = vsel %vm924, %v1031, 0
        %v1197 = vsel %vm987, %v709, 0
        %1199 = vmatprep.subr.bf16.mxu0 0
        %1200 = vmatpush1.bf16.msra.mxu0 0
        %1201 = vmatprep.subr.bf16.mxu0 0
        %1202 = vmatpush1.bf16.msra.mxu0 0
        %1203 = vmatprep.subr.bf16.mxu0 0
        %1204 = vmatpush1.bf16.msra.mxu0 0
        %1205 = vmatprep.subr.bf16.mxu0 0
        %1206 = vmatpush1.bf16.msra.mxu0 0
        %1207 = vmatprep.subr.bf16.mxu0 0
        %1208 = vmatpush1.bf16.msra.mxu0 0
        %1209 = vmatprep.subr.bf16.mxu0 0
        %1210 = vmatpush1.bf16.msra.mxu0 0
        %1211 = vmatprep.subr.bf16.mxu0 0
        %1212 = vmatpush1.bf16.msra.mxu0 0
        %1213 = vmatprep.subr.bf16.mxu0 0
        %1214 = vmatpush1.bf16.msra.mxu0 %v1197
        %1215 = vmatprep.subr.bf16.mxu0 0
        %1216 = vmatpush2.bf16.msra.mxu0 0
        %1217 = vmatprep.subr.bf16.mxu0 0
        %1218 = vmatpush2.bf16.msra.mxu0 0
        %1219 = vmatprep.subr.bf16.mxu0 0
        %1220 = vmatpush2.bf16.msra.mxu0 0
        %1221 = vmatprep.subr.bf16.mxu0 0
        %1222 = vmatpush2.bf16.msra.mxu0 0
        %1223 = vmatprep.subr.bf16.mxu0 0
        %1224 = vmatpush2.bf16.msra.mxu0 0
        %1225 = vmatprep.subr.bf16.mxu0 0
        %1226 = vmatpush2.bf16.msra.mxu0 0
        %1227 = vmatprep.subr.bf16.mxu0 0
        %1228 = vmatpush2.bf16.msra.mxu0 0
        %1229 = vmatprep.subr.bf16.mxu0 0
        %1230 = vmatpush2.bf16.msra.mxu0 0
        %1231 = vmatprep.mubr.bf16.mxu0 0
        %1232 = vmatmul.mubr.bf16.gmra.mxu0 %v1194
        %v1233 = vpop.f32.mrf.mxu0
        %v1234 = vadd.f32 %v1188, %v1233
        %v1235 = vpop.f32.mrf.mxu0
        %v1236 = vpop.f32.mrf.mxu0
        %v1237 = vpop.f32.mrf.mxu0
        %1238 = vdwg.mxu0
        %1239 = vrot.lane.b32.xlu0 %v921, 112
        %v1240 = vpop.permute.xlu0 %1239
        %1241 = vrot.lane.b32.xlu0 %v922, 112
        %v1242 = vpop.permute.xlu0 %1241
        %v1244 = vsel %vm924, %v1240, 0
        %v1247 = vsel %vm924, %v1242, 0
        %1249 = vmatprep.subr.bf16.mxu0 0
        %1250 = vmatpush1.bf16.xpose.msra.mxu0 0
        %1251 = vmatprep.subr.bf16.mxu0 0
        %1252 = vmatpush1.bf16.xpose.msra.mxu0 0
        %1253 = vmatprep.subr.bf16.mxu0 0
        %1254 = vmatpush1.bf16.xpose.msra.mxu0 0
        %1255 = vmatprep.subr.bf16.mxu0 0
        %1256 = vmatpush1.bf16.xpose.msra.mxu0 0
        %1257 = vmatprep.subr.bf16.mxu0 0
        %1258 = vmatpush1.bf16.xpose.msra.mxu0 0
        %1259 = vmatprep.subr.bf16.mxu0 0
        %1260 = vmatpush1.bf16.xpose.msra.mxu0 0
        %1261 = vmatprep.subr.bf16.mxu0 0
        %1262 = vmatpush1.bf16.xpose.msra.mxu0 0
        %1263 = vmatprep.subr.bf16.mxu0 0
        %1264 = vmatpush1.bf16.xpose.msra.mxu0 %v1247
        %1265 = vmatprep.subr.bf16.mxu0 0
        %1266 = vmatpush2.bf16.xpose.msra.mxu0 0
        %1267 = vmatprep.subr.bf16.mxu0 0
        %1268 = vmatpush2.bf16.xpose.msra.mxu0 0
        %1269 = vmatprep.subr.bf16.mxu0 0
        %1270 = vmatpush2.bf16.xpose.msra.mxu0 0
        %1271 = vmatprep.subr.bf16.mxu0 0
        %1272 = vmatpush2.bf16.xpose.msra.mxu0 0
        %1273 = vmatprep.subr.bf16.mxu0 0
        %1274 = vmatpush2.bf16.xpose.msra.mxu0 0
        %1275 = vmatprep.subr.bf16.mxu0 0
        %1276 = vmatpush2.bf16.xpose.msra.mxu0 0
        %1277 = vmatprep.subr.bf16.mxu0 0
        %1278 = vmatpush2.bf16.xpose.msra.mxu0 0
        %1279 = vmatprep.subr.bf16.mxu0 0
        %1280 = vmatpush2.bf16.xpose.msra.mxu0 0
        %1281 = vmatprep.mubr.bf16.mxu0 0
        %1282 = vmatmul.mubr.bf16.gmra.mxu0 %v1244
        %v1283 = vpop.f32.mrf.mxu0
        %v1284 = vadd.f32 0.0, %v1283
        %v1285 = vpop.f32.mrf.mxu0
        %v1286 = vpop.f32.mrf.mxu0
        %v1287 = vpop.f32.mrf.mxu0
        %1288 = vdwg.mxu0
        %v1289 = vmul.f32 %v1284, 0.35355338
        %v1290 = vsel %vm924, %v1289, -inf
        %1291 = vmax.xlane.f32.xlu0 %v1290
        %v1292 = vpop.xlane.xlu0 %1291
        %v1293 = vsub.f32 %v1289, %v1292
        %v1294 = vmul.f32 %v1293, 1.442695
        %v1295 = vpow.pop %v1294
        %v1296 = vsel %vm924, %v1295, 0.0
        %1297 = vadd.xlane.f32.xlu0 %v1296
        %v1298 = vpop.xlane.xlu0 %1297
        %v1299 = vrcp.pop %v1298
        %v1300 = vmul.f32 %v1295, %v1299
        %v1301 = vpack.c.bf16 %v1300, %v1300
        %1302 = vrot.lane.b32.xlu0 %v923, 112
        %v1303 = vpop.permute.xlu0 %1302
        %v1305 = vsel %vm924, %v1301, 0
        %v1308 = vsel %vm987, %v1303, 0
        %1310 = vmatprep.subr.bf16.mxu0 0
        %1311 = vmatpush1.bf16.msra.mxu0 0
        %1312 = vmatprep.subr.bf16.mxu0 0
        %1313 = vmatpush1.bf16.msra.mxu0 0
        %1314 = vmatprep.subr.bf16.mxu0 0
        %1315 = vmatpush1.bf16.msra.mxu0 0
        %1316 = vmatprep.subr.bf16.mxu0 0
        %1317 = vmatpush1.bf16.msra.mxu0 0
        %1318 = vmatprep.subr.bf16.mxu0 0
        %1319 = vmatpush1.bf16.msra.mxu0 0
        %1320 = vmatprep.subr.bf16.mxu0 0
        %1321 = vmatpush1.bf16.msra.mxu0 0
        %1322 = vmatprep.subr.bf16.mxu0 0
        %1323 = vmatpush1.bf16.msra.mxu0 0
        %1324 = vmatprep.subr.bf16.mxu0 0
        %1325 = vmatpush1.bf16.msra.mxu0 %v1308
        %1326 = vmatprep.subr.bf16.mxu0 0
        %1327 = vmatpush2.bf16.msra.mxu0 0
        %1328 = vmatprep.subr.bf16.mxu0 0
        %1329 = vmatpush2.bf16.msra.mxu0 0
        %1330 = vmatprep.subr.bf16.mxu0 0
        %1331 = vmatpush2.bf16.msra.mxu0 0
        %1332 = vmatprep.subr.bf16.mxu0 0
        %1333 = vmatpush2.bf16.msra.mxu0 0
        %1334 = vmatprep.subr.bf16.mxu0 0
        %1335 = vmatpush2.bf16.msra.mxu0 0
        %1336 = vmatprep.subr.bf16.mxu0 0
        %1337 = vmatpush2.bf16.msra.mxu0 0
        %1338 = vmatprep.subr.bf16.mxu0 0
        %1339 = vmatpush2.bf16.msra.mxu0 0
        %1340 = vmatprep.subr.bf16.mxu0 0
        %1341 = vmatpush2.bf16.msra.mxu0 0
        %1342 = vmatprep.mubr.bf16.mxu0 0
        %1343 = vmatmul.mubr.bf16.gmra.mxu0 %v1305
        %v1344 = vpop.f32.mrf.mxu0
        %v1345 = vadd.f32 0.0, %v1344
        %v1346 = vpop.f32.mrf.mxu0
        %v1347 = vpop.f32.mrf.mxu0
        %v1348 = vpop.f32.mrf.mxu0
        %1349 = vdwg.mxu0
        %v1350 = vpack.c.bf16 %v1345, %v1345
        %v1352 = vsel %vm924, %v1350, 0
        %v1355 = vsel %vm987, %v711, 0
        %1357 = vmatprep.subr.bf16.mxu0 0
        %1358 = vmatpush1.bf16.msra.mxu0 0
        %1359 = vmatprep.subr.bf16.mxu0 0
        %1360 = vmatpush1.bf16.msra.mxu0 0
        %1361 = vmatprep.subr.bf16.mxu0 0
        %1362 = vmatpush1.bf16.msra.mxu0 0
        %1363 = vmatprep.subr.bf16.mxu0 0
        %1364 = vmatpush1.bf16.msra.mxu0 0
        %1365 = vmatprep.subr.bf16.mxu0 0
        %1366 = vmatpush1.bf16.msra.mxu0 0
        %1367 = vmatprep.subr.bf16.mxu0 0
        %1368 = vmatpush1.bf16.msra.mxu0 0
        %1369 = vmatprep.subr.bf16.mxu0 0
        %1370 = vmatpush1.bf16.msra.mxu0 0
        %1371 = vmatprep.subr.bf16.mxu0 0
        %1372 = vmatpush1.bf16.msra.mxu0 %v1355
        %1373 = vmatprep.subr.bf16.mxu0 0
        %1374 = vmatpush2.bf16.msra.mxu0 0
        %1375 = vmatprep.subr.bf16.mxu0 0
        %1376 = vmatpush2.bf16.msra.mxu0 0
        %1377 = vmatprep.subr.bf16.mxu0 0
        %1378 = vmatpush2.bf16.msra.mxu0 0
        %1379 = vmatprep.subr.bf16.mxu0 0
        %1380 = vmatpush2.bf16.msra.mxu0 0
        %1381 = vmatprep.subr.bf16.mxu0 0
        %1382 = vmatpush2.bf16.msra.mxu0 0
        %1383 = vmatprep.subr.bf16.mxu0 0
        %1384 = vmatpush2.bf16.msra.mxu0 0
        %1385 = vmatprep.subr.bf16.mxu0 0
        %1386 = vmatpush2.bf16.msra.mxu0 0
        %1387 = vmatprep.subr.bf16.mxu0 0
        %1388 = vmatpush2.bf16.msra.mxu0 0
        %1389 = vmatprep.mubr.bf16.mxu0 0
        %1390 = vmatmul.mubr.bf16.gmra.mxu0 %v1352
        %v1391 = vpop.f32.mrf.mxu0
        %v1392 = vadd.f32 0.0, %v1391
        %v1393 = vpop.f32.mrf.mxu0
        %v1394 = vpop.f32.mrf.mxu0
        %v1395 = vpop.f32.mrf.mxu0
        %1396 = vdwg.mxu0
        %v1397 = vadd.f32 %v1234, %v1392
        %1398 = vrot.lane.b32.xlu0 %v921, 104
        %v1399 = vpop.permute.xlu0 %1398
        %1400 = vrot.lane.b32.xlu0 %v922, 104
        %v1401 = vpop.permute.xlu0 %1400
        %v1403 = vsel %vm924, %v1399, 0
        %v1406 = vsel %vm924, %v1401, 0
        %1408 = vmatprep.subr.bf16.mxu0 0
        %1409 = vmatpush1.bf16.xpose.msra.mxu0 0
        %1410 = vmatprep.subr.bf16.mxu0 0
        %1411 = vmatpush1.bf16.xpose.msra.mxu0 0
        %1412 = vmatprep.subr.bf16.mxu0 0
        %1413 = vmatpush1.bf16.xpose.msra.mxu0 0
        %1414 = vmatprep.subr.bf16.mxu0 0
        %1415 = vmatpush1.bf16.xpose.msra.mxu0 0
        %1416 = vmatprep.subr.bf16.mxu0 0
        %1417 = vmatpush1.bf16.xpose.msra.mxu0 0
        %1418 = vmatprep.subr.bf16.mxu0 0
        %1419 = vmatpush1.bf16.xpose.msra.mxu0 0
        %1420 = vmatprep.subr.bf16.mxu0 0
        %1421 = vmatpush1.bf16.xpose.msra.mxu0 0
        %1422 = vmatprep.subr.bf16.mxu0 0
        %1423 = vmatpush1.bf16.xpose.msra.mxu0 %v1406
        %1424 = vmatprep.subr.bf16.mxu0 0
        %1425 = vmatpush2.bf16.xpose.msra.mxu0 0
        %1426 = vmatprep.subr.bf16.mxu0 0
        %1427 = vmatpush2.bf16.xpose.msra.mxu0 0
        %1428 = vmatprep.subr.bf16.mxu0 0
        %1429 = vmatpush2.bf16.xpose.msra.mxu0 0
        %1430 = vmatprep.subr.bf16.mxu0 0
        %1431 = vmatpush2.bf16.xpose.msra.mxu0 0
        %1432 = vmatprep.subr.bf16.mxu0 0
        %1433 = vmatpush2.bf16.xpose.msra.mxu0 0
        %1434 = vmatprep.subr.bf16.mxu0 0
        %1435 = vmatpush2.bf16.xpose.msra.mxu0 0
        %1436 = vmatprep.subr.bf16.mxu0 0
        %1437 = vmatpush2.bf16.xpose.msra.mxu0 0
        %1438 = vmatprep.subr.bf16.mxu0 0
        %1439 = vmatpush2.bf16.xpose.msra.mxu0 0
        %1440 = vmatprep.mubr.bf16.mxu0 0
        %1441 = vmatmul.mubr.bf16.gmra.mxu0 %v1403
        %v1442 = vpop.f32.mrf.mxu0
        %v1443 = vadd.f32 0.0, %v1442
        %v1444 = vpop.f32.mrf.mxu0
        %v1445 = vpop.f32.mrf.mxu0
        %v1446 = vpop.f32.mrf.mxu0
        %1447 = vdwg.mxu0
        %v1448 = vmul.f32 %v1443, 0.35355338
        %v1449 = vsel %vm924, %v1448, -inf
        %1450 = vmax.xlane.f32.xlu0 %v1449
        %v1451 = vpop.xlane.xlu0 %1450
        %v1452 = vsub.f32 %v1448, %v1451
        %v1453 = vmul.f32 %v1452, 1.442695
        %v1454 = vpow.pop %v1453
        %v1455 = vsel %vm924, %v1454, 0.0
        %1456 = vadd.xlane.f32.xlu0 %v1455
        %v1457 = vpop.xlane.xlu0 %1456
        %v1458 = vrcp.pop %v1457
        %v1459 = vmul.f32 %v1454, %v1458
        %v1460 = vpack.c.bf16 %v1459, %v1459
        %1461 = vrot.lane.b32.xlu0 %v923, 104
        %v1462 = vpop.permute.xlu0 %1461
        %v1464 = vsel %vm924, %v1460, 0
        %v1467 = vsel %vm987, %v1462, 0
        %1469 = vmatprep.subr.bf16.mxu0 0
        %1470 = vmatpush1.bf16.msra.mxu0 0
        %1471 = vmatprep.subr.bf16.mxu0 0
        %1472 = vmatpush1.bf16.msra.mxu0 0
        %1473 = vmatprep.subr.bf16.mxu0 0
        %1474 = vmatpush1.bf16.msra.mxu0 0
        %1475 = vmatprep.subr.bf16.mxu0 0
        %1476 = vmatpush1.bf16.msra.mxu0 0
        %1477 = vmatprep.subr.bf16.mxu0 0
        %1478 = vmatpush1.bf16.msra.mxu0 0
        %1479 = vmatprep.subr.bf16.mxu0 0
        %1480 = vmatpush1.bf16.msra.mxu0 0
        %1481 = vmatprep.subr.bf16.mxu0 0
        %1482 = vmatpush1.bf16.msra.mxu0 0
        %1483 = vmatprep.subr.bf16.mxu0 0
        %1484 = vmatpush1.bf16.msra.mxu0 %v1467
        %1485 = vmatprep.subr.bf16.mxu0 0
        %1486 = vmatpush2.bf16.msra.mxu0 0
        %1487 = vmatprep.subr.bf16.mxu0 0
        %1488 = vmatpush2.bf16.msra.mxu0 0
        %1489 = vmatprep.subr.bf16.mxu0 0
        %1490 = vmatpush2.bf16.msra.mxu0 0
        %1491 = vmatprep.subr.bf16.mxu0 0
        %1492 = vmatpush2.bf16.msra.mxu0 0
        %1493 = vmatprep.subr.bf16.mxu0 0
        %1494 = vmatpush2.bf16.msra.mxu0 0
        %1495 = vmatprep.subr.bf16.mxu0 0
        %1496 = vmatpush2.bf16.msra.mxu0 0
        %1497 = vmatprep.subr.bf16.mxu0 0
        %1498 = vmatpush2.bf16.msra.mxu0 0
        %1499 = vmatprep.subr.bf16.mxu0 0
        %1500 = vmatpush2.bf16.msra.mxu0 0
        %1501 = vmatprep.mubr.bf16.mxu0 0
        %1502 = vmatmul.mubr.bf16.gmra.mxu0 %v1464
        %v1503 = vpop.f32.mrf.mxu0
        %v1504 = vadd.f32 0.0, %v1503
        %v1505 = vpop.f32.mrf.mxu0
        %v1506 = vpop.f32.mrf.mxu0
        %v1507 = vpop.f32.mrf.mxu0
        %1508 = vdwg.mxu0
        %v1509 = vpack.c.bf16 %v1504, %v1504
        %v1511 = vsel %vm924, %v1509, 0
        %v1514 = vsel %vm987, %v712, 0
        %1516 = vmatprep.subr.bf16.mxu0 0
        %1517 = vmatpush1.bf16.msra.mxu0 0
        %1518 = vmatprep.subr.bf16.mxu0 0
        %1519 = vmatpush1.bf16.msra.mxu0 0
        %1520 = vmatprep.subr.bf16.mxu0 0
        %1521 = vmatpush1.bf16.msra.mxu0 0
        %1522 = vmatprep.subr.bf16.mxu0 0
        %1523 = vmatpush1.bf16.msra.mxu0 0
        %1524 = vmatprep.subr.bf16.mxu0 0
        %1525 = vmatpush1.bf16.msra.mxu0 0
        %1526 = vmatprep.subr.bf16.mxu0 0
        %1527 = vmatpush1.bf16.msra.mxu0 0
        %1528 = vmatprep.subr.bf16.mxu0 0
        %1529 = vmatpush1.bf16.msra.mxu0 0
        %1530 = vmatprep.subr.bf16.mxu0 0
        %1531 = vmatpush1.bf16.msra.mxu0 %v1514
        %1532 = vmatprep.subr.bf16.mxu0 0
        %1533 = vmatpush2.bf16.msra.mxu0 0
        %1534 = vmatprep.subr.bf16.mxu0 0
        %1535 = vmatpush2.bf16.msra.mxu0 0
        %1536 = vmatprep.subr.bf16.mxu0 0
        %1537 = vmatpush2.bf16.msra.mxu0 0
        %1538 = vmatprep.subr.bf16.mxu0 0
        %1539 = vmatpush2.bf16.msra.mxu0 0
        %1540 = vmatprep.subr.bf16.mxu0 0
        %1541 = vmatpush2.bf16.msra.mxu0 0
        %1542 = vmatprep.subr.bf16.mxu0 0
        %1543 = vmatpush2.bf16.msra.mxu0 0
        %1544 = vmatprep.subr.bf16.mxu0 0
        %1545 = vmatpush2.bf16.msra.mxu0 0
        %1546 = vmatprep.subr.bf16.mxu0 0
        %1547 = vmatpush2.bf16.msra.mxu0 0
        %1548 = vmatprep.mubr.bf16.mxu0 0
        %1549 = vmatmul.mubr.bf16.gmra.mxu0 %v1511
        %v1550 = vpop.f32.mrf.mxu0
        %v1551 = vadd.f32 0.0, %v1550
        %v1552 = vpop.f32.mrf.mxu0
        %v1553 = vpop.f32.mrf.mxu0
        %v1554 = vpop.f32.mrf.mxu0
        %1555 = vdwg.mxu0
        %v1556 = vadd.f32 %v1397, %v1551
        %v1558 = vlaneseq
        %v1559 = vshrl.u32 %v1558, 7
        %v1560 = vsub.s32 0, %v1559
        %v1561 = vrot.slane %v728, %v1560
        %v1563 = vadd.f32 %v1556, %v1561
        %v1564 = vadd.f32 %v735, %v1563
        %v1565 = vsel %vm758, %v1564, 0.0
        %1566 = vadd.xlane.f32.xlu0 %v1565
        %v1567 = vpop.xlane.xlu0 %1566
        %v1568 = vrcp.pop 32.0
        %v1569 = vmul.f32 %v1567, %v1568
        %v1570 = vsub.f32 %v1564, %v1569
        %v1571 = vmul.f32 %v1570, %v1570
        %v1572 = vsel %vm758, %v1571, 0.0
        %1573 = vadd.xlane.f32.xlu0 %v1572
        %v1574 = vpop.xlane.xlu0 %1573
        %v1575 = vmul.f32 %v1574, %v1568
        %v1576 = vadd.f32 %v1575, 1e-05
        %v1577 = vrsqrt.pop %v1576
        %v1578 = vmul.f32 %v1570, %v1577
        %v1580 = vlaneseq
        %v1581 = vshrl.u32 %v1580, 7
        %v1582 = vsub.s32 0, %v1581
        %v1583 = vrot.slane %v731, %v1582
        %v1585 = vmul.f32 %v1578, %v1583
        %v1587 = vlaneseq
        %v1588 = vshrl.u32 %v1587, 7
        %v1589 = vsub.s32 0, %v1588
        %v1590 = vrot.slane %v732, %v1589
        %v1592 = vadd.f32 %v1585, %v1590
        %v1593 = vpack.c.bf16 %v1592, %v1592
        %v1595 = vlaneseq
        %v1596 = vshrl.u32 %v1595, 7
        %v1597 = vsub.s32 0, %v1596
        %v1598 = vrot.slane %v729, %v1597
        %v1604 = vunpack.c.l.b16 %v713
        %v1605 = vunpack.c.l.b16 %v714
        %v1606 = vunpack.c.l.b16 %v715
        %v1607 = vunpack.c.l.b16 %v716
        %v1608 = vpack.c.b16 %v1605, %v1604
        %v1609 = vpack.c.b16 %v1607, %v1606
        %v1613 = vsel %vm758, %v1593, 0
        %1615 = vmatprep.subr.bf16.mxu0 0
        %1616 = vmatpush1.bf16.msra.mxu0 0
        %1617 = vmatprep.subr.bf16.mxu0 0
        %1618 = vmatpush1.bf16.msra.mxu0 0
        %1619 = vmatprep.subr.bf16.mxu0 0
        %1620 = vmatpush1.bf16.msra.mxu0 0
        %1621 = vmatprep.subr.bf16.mxu0 0
        %1622 = vmatpush1.bf16.msra.mxu0 0
        %1623 = vmatprep.subr.bf16.mxu0 0
        %1624 = vmatpush1.bf16.msra.mxu0 0
        %1625 = vmatprep.subr.bf16.mxu0 0
        %1626 = vmatpush1.bf16.msra.mxu0 0
        %1627 = vmatprep.subr.bf16.mxu0 0
        %1628 = vmatpush1.bf16.msra.mxu0 %v1609
        %1629 = vmatprep.subr.bf16.mxu0 0
        %1630 = vmatpush1.bf16.msra.mxu0 %v1608
        %1631 = vmatprep.subr.bf16.mxu0 0
        %1632 = vmatpush2.bf16.msra.mxu0 0
        %1633 = vmatprep.subr.bf16.mxu0 0
        %1634 = vmatpush2.bf16.msra.mxu0 0
        %1635 = vmatprep.subr.bf16.mxu0 0
        %1636 = vmatpush2.bf16.msra.mxu0 0
        %1637 = vmatprep.subr.bf16.mxu0 0
        %1638 = vmatpush2.bf16.msra.mxu0 0
        %1639 = vmatprep.subr.bf16.mxu0 0
        %1640 = vmatpush2.bf16.msra.mxu0 0
        %1641 = vmatprep.subr.bf16.mxu0 0
        %1642 = vmatpush2.bf16.msra.mxu0 0
        %1643 = vmatprep.subr.bf16.mxu0 0
        %1644 = vmatpush2.bf16.msra.mxu0 0
        %1645 = vmatprep.subr.bf16.mxu0 0
        %1646 = vmatpush2.bf16.msra.mxu0 0
        %1647 = vmatprep.mubr.bf16.mxu0 0
        %1648 = vmatmul.mubr.bf16.gmra.mxu0 %v1613
        %v1649 = vpop.f32.mrf.mxu0
        %v1650 = vadd.f32 %v1598, %v1649
        %v1651 = vpop.f32.mrf.mxu0
        %v1652 = vpop.f32.mrf.mxu0
        %v1653 = vpop.f32.mrf.mxu0
        %1654 = vdwg.mxu0
        %v1655 = vmul.f32 %v1650, 0.5
        %v1656 = vmul.f32 %v1650, 0.044715
        %v1657 = vmul.f32 %v1656, %v1650
        %v1658 = vmul.f32 %v1657, %v1650
        %v1659 = vadd.f32 %v1650, %v1658
        %v1660 = vmul.f32 %v1659, 0.7978846
        %v1661 = vtanh.pop %v1660
        %v1662 = vadd.f32 %v1661, 1.0
        %v1663 = vmul.f32 %v1655, %v1662
        %v1664 = vpack.c.bf16 %v1663, %v1663
        %v1666 = vlaneseq
        %v1667 = vshrl.u32 %v1666, 7
        %v1668 = vsub.s32 0, %v1667
        %v1669 = vrot.slane %v730, %v1668
        %v1679 = vunpack.c.l.b16 %v717
        %v1680 = vunpack.c.l.b16 %v718
        %v1681 = vunpack.c.l.b16 %v719
        %v1682 = vunpack.c.l.b16 %v720
        %v1683 = vunpack.c.l.b16 %v721
        %v1684 = vunpack.c.l.b16 %v722
        %v1685 = vunpack.c.l.b16 %v723
        %v1686 = vunpack.c.l.b16 %v724
        %v1687 = vpack.c.b16 %v1680, %v1679
        %v1688 = vpack.c.b16 %v1682, %v1681
        %v1689 = vpack.c.b16 %v1684, %v1683
        %v1690 = vpack.c.b16 %v1686, %v1685
        %vm1695 = vcmask 523264
        %v1697 = vsel %vm1695, %v1664, 0
        %1699 = vmatprep.subr.bf16.mxu0 0
        %1700 = vmatpush1.bf16.msra.mxu0 0
        %1701 = vmatprep.subr.bf16.mxu0 0
        %1702 = vmatpush1.bf16.msra.mxu0 0
        %1703 = vmatprep.subr.bf16.mxu0 0
        %1704 = vmatpush1.bf16.msra.mxu0 0
        %1705 = vmatprep.subr.bf16.mxu0 0
        %1706 = vmatpush1.bf16.msra.mxu0 0
        %1707 = vmatprep.subr.bf16.mxu0 0
        %1708 = vmatpush1.bf16.msra.mxu0 %v1690
        %1709 = vmatprep.subr.bf16.mxu0 0
        %1710 = vmatpush1.bf16.msra.mxu0 %v1689
        %1711 = vmatprep.subr.bf16.mxu0 0
        %1712 = vmatpush1.bf16.msra.mxu0 %v1688
        %1713 = vmatprep.subr.bf16.mxu0 0
        %1714 = vmatpush1.bf16.msra.mxu0 %v1687
        %1715 = vmatprep.subr.bf16.mxu0 0
        %1716 = vmatpush2.bf16.msra.mxu0 0
        %1717 = vmatprep.subr.bf16.mxu0 0
        %1718 = vmatpush2.bf16.msra.mxu0 0
        %1719 = vmatprep.subr.bf16.mxu0 0
        %1720 = vmatpush2.bf16.msra.mxu0 0
        %1721 = vmatprep.subr.bf16.mxu0 0
        %1722 = vmatpush2.bf16.msra.mxu0 0
        %1723 = vmatprep.subr.bf16.mxu0 0
        %1724 = vmatpush2.bf16.msra.mxu0 0
        %1725 = vmatprep.subr.bf16.mxu0 0
        %1726 = vmatpush2.bf16.msra.mxu0 0
        %1727 = vmatprep.subr.bf16.mxu0 0
        %1728 = vmatpush2.bf16.msra.mxu0 0
        %1729 = vmatprep.subr.bf16.mxu0 0
        %1730 = vmatpush2.bf16.msra.mxu0 0
        %1731 = vmatprep.mubr.bf16.mxu0 0
        %1732 = vmatmul.mubr.bf16.gmra.mxu0 %v1697
        %v1733 = vpop.f32.mrf.mxu0
        %v1734 = vadd.f32 %v1669, %v1733
        %v1735 = vpop.f32.mrf.mxu0
        %v1736 = vpop.f32.mrf.mxu0
        %v1737 = vpop.f32.mrf.mxu0
        %1738 = vdwg.mxu0
        %v1739 = vadd.f32 %v1592, %v1734
        %v1740 = vsel %vm758, %v1739, 0.0
        %1741 = vadd.xlane.f32.xlu0 %v1740
        %v1742 = vpop.xlane.xlu0 %1741
        %v1743 = vmul.f32 %v1742, %v1568
        %v1744 = vsub.f32 %v1739, %v1743
        %v1745 = vmul.f32 %v1744, %v1744
        %v1746 = vsel %vm758, %v1745, 0.0
        %1747 = vadd.xlane.f32.xlu0 %v1746
        %v1748 = vpop.xlane.xlu0 %1747
        %v1749 = vmul.f32 %v1748, %v1568
        %v1750 = vadd.f32 %v1749, 1e-05
        %v1751 = vrsqrt.pop %v1750
        %v1752 = vmul.f32 %v1744, %v1751
        %v1754 = vlaneseq
        %v1755 = vshrl.u32 %v1754, 7
        %v1756 = vsub.s32 0, %v1755
        %v1757 = vrot.slane %v733, %v1756
        %v1759 = vmul.f32 %v1752, %v1757
        %v1761 = vlaneseq
        %v1762 = vshrl.u32 %v1761, 7
        %v1763 = vsub.s32 0, %v1762
        %v1764 = vrot.slane %v734, %v1763
        %v1766 = vadd.f32 %v1759, %v1764
        %1767 = vst.msk [vmem:[%s687] sm:$0xff] %vm758, %v1766
        %s1768 = sand.u32 %s446, 1
        %s1769 = scalar_lea.sflag [#allocation4], %s1768
        %s1770 = sand.u32 %s446, 1
        %s1771 = smul.addr %s1770, 8
        %s1772 = scalar_lea.vmem [#allocation14], %s1771
        // Predicated region
        $region121: #{tpu_custom_call.1} parent=91 // pred_check
          %p1773 = pneg %p456
        $region122: #{tpu_custom_call.1} parent=91 // pred_check_branch
          %1775 = sbr.rel (%p1773) target = $region124
        $region123: #{tpu_custom_call.1} parent=91 // pred_region
          %s1777 = ssub.s32 128, 128
          %1778 = vsyncadd %s1769, %s1777
          %s1779 = sadd.s32 %s41, %s40
          %s1780 = smul.addr %s1779, 128
          %s1781 = scalar_lea.hbm %s18, %s1780
          %s1783 = sshll.u32 %s1772, 4
          %s1784 = int_to_ptr.vmem [resolvable:$true] %s1783
          %1786 = dma.vmem_to_hbm [thread:$0]  %s1784, 128, %s1781, %s1769
        $region124: #{tpu_custom_call.1} parent=91 // pred_fallthru
          _
      $region92: #{tpu_custom_call.1} parent=5 // pred_fallthru
        _
      %p1787 = scmp.le.s32.totalorder 2, %s31
      // Predicated region
      $region125: #{tpu_custom_call.1} parent=5 // pred_check
        %p1788 = pneg %p1787
      $region126: #{tpu_custom_call.1} parent=5 // pred_check_branch
        %1790 = sbr.rel (%p1788) target = $region128
      $region127: #{tpu_custom_call.1} parent=5 // pred_region
        %s1791 = ssub.s32 %s31, 2
        // Predicated region
        $region129: #{tpu_custom_call.1} parent=127 // pred_check
          %p1792 = pneg %p462
        $region130: #{tpu_custom_call.1} parent=127 // pred_check_branch
          %1794 = sbr.rel (%p1792) target = $region132
        $region131: #{tpu_custom_call.1} parent=127 // pred_region
          %s1795 = sand.u32 %s447, 1
          %s1796 = scalar_lea.sflag [#allocation4], %s1795
          %s1797 = sand.u32 %s447, 1
          %s1798 = smul.addr %s1797, 8
          %s1799 = scalar_lea.vmem [#allocation14], %s1798
          %1800 = dma.done %s1796, 128
        $region132: #{tpu_custom_call.1} parent=127 // pred_fallthru
          _
      $region128: #{tpu_custom_call.1} parent=5 // pred_fallthru
        _
    $region6: #{tpu_custom_call.1} parent=1 // loop_footer
      %s35 = sadd.s32 1, %s31
    $region7: #{tpu_custom_call.1} parent=1 // loop_footer_branch
      %30 = sbr.rel target = $region3
    $region8: #{tpu_custom_call.1} parent=1 // loop_exit
      _
    %1801 = vsyncpa [#allocation3], 1
    %s1802 = scalar_lea.sflag [#allocation3], 1
    %1803 = vsyncpa %s1802, 1
    %1804 = vsyncpa [#allocation6], 1
    %1805 = vsyncpa [#allocation9], 1
    %1806 = vsyncpa [#allocation12], 1
    %1807 = vsyncpa [#allocation4], 1
    %s1808 = scalar_lea.sflag [#allocation4], 1
    %1809 = vsyncpa %s1808, 1

</llo_original>
